<compile_context>
chip_gen: v7x
topology: tpu7x:2x2x1
jax: 0.10.0
libtpu: 0.0.40
codegen_flags: <defaults>
</compile_context>

<pallas_src>
import jax
import jax.numpy as jnp
from jax.experimental import pallas as pl
from jax.experimental.pallas import tpu as pltpu


def critic_kernel(x_ref, hc0_ref, w1_ref, wih_ref, whh_ref, wv_ref, bias_ref,
                  v_ref, hcT_ref):
    TB = x_ref.shape[0]
    H1 = w1_ref.shape[1]
    H2 = whh_ref.shape[0]
    Bp = hc0_ref.shape[1]
    VW = wv_ref.shape[1]
    T = TB // Bp                                  # static Python int

    b1 = bias_ref[0:1, 0:H1]                      # (1, H1)
    bl = bias_ref[1:2, 0:4 * H2]                  # (1, 4*H2)
    bv = bias_ref[2:3, 0:VW]                      # (1, VW)

    # ---- fc1 + ReLU + LSTM input projection for ALL timesteps (2 big matmuls) ----
    feat = jnp.maximum(
        jnp.dot(x_ref[...], w1_ref[...], preferred_element_type=jnp.float32) + b1,
        0.0)                                                       # (T*Bp, H1)
    gx = (jnp.dot(feat, wih_ref[...], preferred_element_type=jnp.float32)
          + bl)                                                    # (T*Bp, 4*H2)

    w_hh = whh_ref[...]                                            # (H2, 4*H2)

    # ---- LSTM recurrence: state stays in vregs, loop fully unrolled ----
    h = hc0_ref[0, :, :]                                           # (Bp, H2)
    c = hc0_ref[1, :, :]                                           # (Bp, H2)
    hs = []
    for t in range(T):                                             # T static -> unrolled
        gates = gx[t * Bp:(t + 1) * Bp, :] + jnp.dot(
            h, w_hh, preferred_element_type=jnp.float32)           # (Bp, 4*H2)
        # PyTorch gate order (i, f, g, o); ordered to shorten the serial chain:
        # i/f/g -> c update -> tanh(c) pushed to EUP -> o -> h.
        i_f = jax.nn.sigmoid(gates[:, 0:2 * H2])
        i_g = i_f[:, 0:H2]
        f_g = i_f[:, H2:2 * H2]
        g_g = jnp.tanh(gates[:, 2 * H2:3 * H2])
        c = f_g * c + i_g * g_g
        tc = jnp.tanh(c)
        o_g = jax.nn.sigmoid(gates[:, 3 * H2:4 * H2])
        h = o_g * tc
        hs.append(h)

    hcT_ref[0, :, :] = h
    hcT_ref[1, :, :] = c

    # ---- value head over all timesteps at once; lane-dense (padded) output ----
    h_all = jnp.concatenate(hs, axis=0)                            # (T*Bp, H2)
    v_ref[...] = (jnp.dot(h_all, wv_ref[...],
                          preferred_element_type=jnp.float32) + bv)


def critic_forward(x, hidden, params):
    """x: (B, T, state_dim) batch-first (PyTorch convention);
    hidden = (h0, c0), each (1, B, H2). Returns (v, (hT, cT)) with v (B, T, 1)."""
    B, T, S = x.shape
    h0, c0 = hidden
    H1 = params["w1"].shape[1]
    H2 = params["whh"].shape[0]

    Bp = ((B + 7) // 8) * 8          # sublane-aligned batch
    VW = 128                         # lane-dense value-head output width
    BW = max(H1, 4 * H2, VW)         # packed-bias row width

    # Time-major flat layout, batch padded to Bp: row = t*Bp + b.
    x_tm = jnp.transpose(x, (1, 0, 2)).astype(jnp.float32)          # (T, B, S)
    x_tm = jnp.pad(x_tm, ((0, 0), (0, Bp - B), (0, 0))).reshape(T * Bp, S)

    # h0/c0 packed into one (2, Bp, H2) input.
    hc0 = jnp.stack([h0[0], c0[0]], axis=0).astype(jnp.float32)     # (2, B, H2)
    hc0 = jnp.pad(hc0, ((0, 0), (0, Bp - B), (0, 0)))

    # Value-head weight padded to 128 output lanes (real column = lane 0).
    wv_pad = jnp.zeros((H2, VW), jnp.float32).at[:, 0:1].set(
        params["wv"].astype(jnp.float32))

    # b1 / bl / bv packed into a single (3, BW) bias array.
    def pad_row(v, width):
        v = jnp.asarray(v, jnp.float32).reshape(1, -1)
        return jnp.pad(v, ((0, 0), (0, width - v.shape[1])))

    bias_pack = jnp.concatenate([
        pad_row(params["b1"], BW),
        pad_row(params["bl"], BW),
        pad_row(jnp.broadcast_to(params["bv"].reshape(1, 1), (1, VW)), BW),
    ], axis=0)                                                       # (3, BW)

    vmem = pl.BlockSpec(memory_space=pltpu.MemorySpace.VMEM)
    out_shapes = (
        jax.ShapeDtypeStruct((T * Bp, VW), jnp.float32),             # values (lane 0)
        jax.ShapeDtypeStruct((2, Bp, H2), jnp.float32),              # packed (h_T, c_T)
    )

    v_pad, hcT = pl.pallas_call(
        critic_kernel,
        out_shape=out_shapes,
        in_specs=[vmem] * 7,
        out_specs=(vmem, vmem),
    )(x_tm, hc0,
      params["w1"].astype(jnp.float32),
      params["wih"].astype(jnp.float32),
      params["whh"].astype(jnp.float32),
      wv_pad, bias_pack)

    v = jnp.transpose(v_pad.reshape(T, Bp, VW)[:, :B, 0:1], (1, 0, 2))  # (B, T, 1)
    hT = hcT[0, :B][None, ...]
    cT = hcT[1, :B][None, ...]
    return v, (hT, cT)


def init_params(key, state_dim, hidden_size=(64, 32)):
    """Deterministic init mirroring Critic.init() (kaiming / orthogonal / constants).
    Weights are stored pre-transposed as (in, out) so the kernel does x @ W.
    LSTM gate order is the native PyTorch order (i, f, g, o)."""
    H1, H2 = hidden_size
    k1, k2, k3, k4 = jax.random.split(key, 4)

    def orthogonal(k, shape):
        a = jax.random.normal(k, shape, jnp.float32)
        if shape[0] >= shape[1]:
            q, r = jnp.linalg.qr(a)
            return q * jnp.sign(jnp.diag(r))[None, :]
        q, r = jnp.linalg.qr(a.T)
        return (q * jnp.sign(jnp.diag(r))[None, :]).T

    w1 = jax.random.normal(k1, (state_dim, H1), jnp.float32) * jnp.sqrt(2.0 / state_dim)
    b1 = jnp.zeros((1, H1), jnp.float32)
    wv = jax.random.normal(k2, (H2, 1), jnp.float32) * jnp.sqrt(2.0 / H2)
    bv = jnp.zeros((1, 1), jnp.float32)
    wih = orthogonal(k3, (H1, 4 * H2))            # transposed view of torch (4*H2, H1)
    whh = orthogonal(k4, (H2, 4 * H2))            # transposed view of torch (4*H2, H2)
    # Critic.init() sets bias_ih_l0 = bias_hh_l0 = 1.0 -> combined bias = 2.0.
    bl = jnp.full((1, 4 * H2), 2.0, jnp.float32)
    # TODO(synk): Adam optimizer and the rollout buffer (self.data) are training
    # utilities, not part of the forward pass, and are intentionally omitted.
    return dict(w1=w1, b1=b1, wih=wih, whh=whh, bl=bl, wv=wv, bv=bv)


def critic_ref(x, hidden, params):
    """Pure-JAX reference of Critic.forward for correctness checking."""
    B, T, _ = x.shape
    H2 = params["whh"].shape[0]
    h, c = hidden[0][0], hidden[1][0]
    feat = jax.nn.relu(jnp.einsum("bts,sh->bth", x, params["w1"]) + params["b1"])
    hs = []
    for t in range(T):
        gates = feat[:, t, :] @ params["wih"] + h @ params["whh"] + params["bl"]
        i = jax.nn.sigmoid(gates[:, 0:H2])
        f = jax.nn.sigmoid(gates[:, H2:2 * H2])
        g = jnp.tanh(gates[:, 2 * H2:3 * H2])
        o = jax.nn.sigmoid(gates[:, 3 * H2:4 * H2])
        c = f * c + i * g
        h = o * jnp.tanh(c)
        hs.append(h)
    h_all = jnp.stack(hs, axis=1)                          # (B, T, H2)
    v = h_all @ params["wv"] + params["bv"]                # (B, T, 1)
    return v, (h[None, ...], c[None, ...])


if __name__ == "__main__":
    B, T = 2, 8
    STATE_DIM = 16
    HIDDEN = (64, 32)

    key = jax.random.PRNGKey(0)
    pkey, xkey = jax.random.split(key)
    params = init_params(pkey, STATE_DIM, HIDDEN)

    x = jax.random.normal(xkey, (B, T, STATE_DIM), jnp.float32)
    h0 = jnp.zeros((1, B, HIDDEN[1]), jnp.float32)
    c0 = jnp.zeros((1, B, HIDDEN[1]), jnp.float32)

    v, (hT, cT) = critic_forward(x, (h0, c0), params)
    jax.block_until_ready((v, hT, cT))

    assert v.shape == (B, T, 1)
    assert hT.shape == (1, B, HIDDEN[1]) and cT.shape == (1, B, HIDDEN[1])

    # Correctness vs pure-JAX reference.
    v_ref, (hT_ref, cT_ref) = critic_ref(x, (h0, c0), params)
    assert bool(jnp.allclose(v, v_ref, atol=1e-4, rtol=1e-4))
    assert bool(jnp.allclose(hT, hT_ref, atol=1e-4, rtol=1e-4))
    assert bool(jnp.allclose(cT, cT_ref, atol=1e-4, rtol=1e-4))
    print("KERNEL_OK")
</pallas_src>

<mosaic_0001>
module attributes {stable_mosaic.version = 11 : i64} {
  func.func @critic_kernel(%arg0: memref<64x16xf32, #tpu.memory_space<vmem>>, %arg1: memref<2x8x32xf32, #tpu.memory_space<vmem>>, %arg2: memref<16x64xf32, #tpu.memory_space<vmem>>, %arg3: memref<64x128xf32, #tpu.memory_space<vmem>>, %arg4: memref<32x128xf32, #tpu.memory_space<vmem>>, %arg5: memref<32x128xf32, #tpu.memory_space<vmem>>, %arg6: memref<3x128xf32, #tpu.memory_space<vmem>>, %arg7: memref<64x128xf32, #tpu.memory_space<vmem>>, %arg8: memref<2x8x32xf32, #tpu.memory_space<vmem>>) attributes {dimension_semantics = [], scalar_prefetch = 0 : i64, scratch_operands = 0 : i64, tpu.core_type = #tpu.core_type<tc>} {
    %c0 = arith.constant 0 : index
    %c0_0 = arith.constant 0 : index
    %0 = vector.load %arg6[%c0, %c0_0] : memref<3x128xf32, #tpu.memory_space<vmem>>, vector<1x64xf32>
    %c1 = arith.constant 1 : index
    %c0_1 = arith.constant 0 : index
    %1 = vector.load %arg6[%c1, %c0_1] : memref<3x128xf32, #tpu.memory_space<vmem>>, vector<1x128xf32>
    %c2 = arith.constant 2 : index
    %c0_2 = arith.constant 0 : index
    %2 = vector.load %arg6[%c2, %c0_2] : memref<3x128xf32, #tpu.memory_space<vmem>>, vector<1x128xf32>
    %c0_3 = arith.constant 0 : index
    %c0_4 = arith.constant 0 : index
    %3 = vector.load %arg0[%c0_3, %c0_4] : memref<64x16xf32, #tpu.memory_space<vmem>>, vector<64x16xf32>
    %c0_5 = arith.constant 0 : index
    %c0_6 = arith.constant 0 : index
    %4 = vector.load %arg2[%c0_5, %c0_6] : memref<16x64xf32, #tpu.memory_space<vmem>>, vector<16x64xf32>
    %cst = arith.constant dense<0.000000e+00> : vector<64x64xf32>
    %5 = tpu.matmul %3, %4, %cst {dimension_numbers = #tpu.dot_dimension_numbers<[1], [0], [0], [1], [0, 0, 1, 1], [], []>} : vector<64x16xf32>, vector<16x64xf32>, vector<64x64xf32> -> vector<64x64xf32>
    %6 = vector.broadcast %0 : vector<1x64xf32> to vector<64x64xf32>
    %7 = arith.addf %5, %6 : vector<64x64xf32>
    %cst_7 = arith.constant 0.000000e+00 : f32
    %8 = vector.broadcast %cst_7 : f32 to vector<64x64xf32>
    %9 = arith.maximumf %7, %8 : vector<64x64xf32>
    %c0_8 = arith.constant 0 : index
    %c0_9 = arith.constant 0 : index
    %10 = vector.load %arg3[%c0_8, %c0_9] : memref<64x128xf32, #tpu.memory_space<vmem>>, vector<64x128xf32>
    %cst_10 = arith.constant dense<0.000000e+00> : vector<64x128xf32>
    %11 = tpu.matmul %9, %10, %cst_10 {dimension_numbers = #tpu.dot_dimension_numbers<[1], [0], [0], [1], [0, 0, 1, 1], [], []>} : vector<64x64xf32>, vector<64x128xf32>, vector<64x128xf32> -> vector<64x128xf32>
    %12 = vector.broadcast %1 : vector<1x128xf32> to vector<64x128xf32>
    %13 = arith.addf %11, %12 : vector<64x128xf32>
    %c0_11 = arith.constant 0 : index
    %c0_12 = arith.constant 0 : index
    %14 = vector.load %arg4[%c0_11, %c0_12] : memref<32x128xf32, #tpu.memory_space<vmem>>, vector<32x128xf32>
    %c0_13 = arith.constant 0 : index
    %c0_14 = arith.constant 0 : index
    %c0_15 = arith.constant 0 : index
    %15 = vector.load %arg1[%c0_13, %c0_14, %c0_15] : memref<2x8x32xf32, #tpu.memory_space<vmem>>, vector<1x8x32xf32>
    %16 = vector.shape_cast %15 : vector<1x8x32xf32> to vector<8x32xf32>
    %c1_16 = arith.constant 1 : index
    %c0_17 = arith.constant 0 : index
    %c0_18 = arith.constant 0 : index
    %17 = vector.load %arg1[%c1_16, %c0_17, %c0_18] : memref<2x8x32xf32, #tpu.memory_space<vmem>>, vector<1x8x32xf32>
    %18 = vector.shape_cast %17 : vector<1x8x32xf32> to vector<8x32xf32>
    %19 = vector.extract_strided_slice %13 {offsets = [0, 0], sizes = [8, 128], strides = [1, 1]} : vector<64x128xf32> to vector<8x128xf32>
    %cst_19 = arith.constant dense<0.000000e+00> : vector<8x128xf32>
    %20 = tpu.matmul %16, %14, %cst_19 {dimension_numbers = #tpu.dot_dimension_numbers<[1], [0], [0], [1], [0, 0, 1, 1], [], []>} : vector<8x32xf32>, vector<32x128xf32>, vector<8x128xf32> -> vector<8x128xf32>
    %21 = arith.addf %19, %20 : vector<8x128xf32>
    %22 = vector.extract_strided_slice %21 {offsets = [0, 0], sizes = [8, 64], strides = [1, 1]} : vector<8x128xf32> to vector<8x64xf32>
    %23 = arith.negf %22 : vector<8x64xf32>
    %24 = math.exp %23 : vector<8x64xf32>
    %cst_20 = arith.constant 1.000000e+00 : f32
    %25 = vector.broadcast %cst_20 : f32 to vector<8x64xf32>
    %26 = arith.addf %25, %24 : vector<8x64xf32>
    %27 = arith.divf %25, %26 : vector<8x64xf32>
    %28 = vector.extract_strided_slice %27 {offsets = [0, 0], sizes = [8, 32], strides = [1, 1]} : vector<8x64xf32> to vector<8x32xf32>
    %29 = vector.extract_strided_slice %27 {offsets = [0, 32], sizes = [8, 32], strides = [1, 1]} : vector<8x64xf32> to vector<8x32xf32>
    %30 = vector.extract_strided_slice %21 {offsets = [0, 64], sizes = [8, 32], strides = [1, 1]} : vector<8x128xf32> to vector<8x32xf32>
    %31 = math.tanh %30 : vector<8x32xf32>
    %32 = arith.mulf %29, %18 : vector<8x32xf32>
    %33 = arith.mulf %28, %31 : vector<8x32xf32>
    %34 = arith.addf %32, %33 : vector<8x32xf32>
    %35 = math.tanh %34 : vector<8x32xf32>
    %36 = vector.extract_strided_slice %21 {offsets = [0, 96], sizes = [8, 32], strides = [1, 1]} : vector<8x128xf32> to vector<8x32xf32>
    %37 = arith.negf %36 : vector<8x32xf32>
    %38 = math.exp %37 : vector<8x32xf32>
    %cst_21 = arith.constant 1.000000e+00 : f32
    %39 = vector.broadcast %cst_21 : f32 to vector<8x32xf32>
    %40 = arith.addf %39, %38 : vector<8x32xf32>
    %41 = arith.divf %39, %40 : vector<8x32xf32>
    %42 = arith.mulf %41, %35 : vector<8x32xf32>
    %43 = vector.extract_strided_slice %13 {offsets = [8, 0], sizes = [8, 128], strides = [1, 1]} : vector<64x128xf32> to vector<8x128xf32>
    %cst_22 = arith.constant dense<0.000000e+00> : vector<8x128xf32>
    %44 = tpu.matmul %42, %14, %cst_22 {dimension_numbers = #tpu.dot_dimension_numbers<[1], [0], [0], [1], [0, 0, 1, 1], [], []>} : vector<8x32xf32>, vector<32x128xf32>, vector<8x128xf32> -> vector<8x128xf32>
    %45 = arith.addf %43, %44 : vector<8x128xf32>
    %46 = vector.extract_strided_slice %45 {offsets = [0, 0], sizes = [8, 64], strides = [1, 1]} : vector<8x128xf32> to vector<8x64xf32>
    %47 = arith.negf %46 : vector<8x64xf32>
    %48 = math.exp %47 : vector<8x64xf32>
    %cst_23 = arith.constant 1.000000e+00 : f32
    %49 = vector.broadcast %cst_23 : f32 to vector<8x64xf32>
    %50 = arith.addf %49, %48 : vector<8x64xf32>
    %51 = arith.divf %49, %50 : vector<8x64xf32>
    %52 = vector.extract_strided_slice %51 {offsets = [0, 0], sizes = [8, 32], strides = [1, 1]} : vector<8x64xf32> to vector<8x32xf32>
    %53 = vector.extract_strided_slice %51 {offsets = [0, 32], sizes = [8, 32], strides = [1, 1]} : vector<8x64xf32> to vector<8x32xf32>
    %54 = vector.extract_strided_slice %45 {offsets = [0, 64], sizes = [8, 32], strides = [1, 1]} : vector<8x128xf32> to vector<8x32xf32>
    %55 = math.tanh %54 : vector<8x32xf32>
    %56 = arith.mulf %53, %34 : vector<8x32xf32>
    %57 = arith.mulf %52, %55 : vector<8x32xf32>
    %58 = arith.addf %56, %57 : vector<8x32xf32>
    %59 = math.tanh %58 : vector<8x32xf32>
    %60 = vector.extract_strided_slice %45 {offsets = [0, 96], sizes = [8, 32], strides = [1, 1]} : vector<8x128xf32> to vector<8x32xf32>
    %61 = arith.negf %60 : vector<8x32xf32>
    %62 = math.exp %61 : vector<8x32xf32>
    %cst_24 = arith.constant 1.000000e+00 : f32
    %63 = vector.broadcast %cst_24 : f32 to vector<8x32xf32>
    %64 = arith.addf %63, %62 : vector<8x32xf32>
    %65 = arith.divf %63, %64 : vector<8x32xf32>
    %66 = arith.mulf %65, %59 : vector<8x32xf32>
    %67 = vector.extract_strided_slice %13 {offsets = [16, 0], sizes = [8, 128], strides = [1, 1]} : vector<64x128xf32> to vector<8x128xf32>
    %cst_25 = arith.constant dense<0.000000e+00> : vector<8x128xf32>
    %68 = tpu.matmul %66, %14, %cst_25 {dimension_numbers = #tpu.dot_dimension_numbers<[1], [0], [0], [1], [0, 0, 1, 1], [], []>} : vector<8x32xf32>, vector<32x128xf32>, vector<8x128xf32> -> vector<8x128xf32>
    %69 = arith.addf %67, %68 : vector<8x128xf32>
    %70 = vector.extract_strided_slice %69 {offsets = [0, 0], sizes = [8, 64], strides = [1, 1]} : vector<8x128xf32> to vector<8x64xf32>
    %71 = arith.negf %70 : vector<8x64xf32>
    %72 = math.exp %71 : vector<8x64xf32>
    %cst_26 = arith.constant 1.000000e+00 : f32
    %73 = vector.broadcast %cst_26 : f32 to vector<8x64xf32>
    %74 = arith.addf %73, %72 : vector<8x64xf32>
    %75 = arith.divf %73, %74 : vector<8x64xf32>
    %76 = vector.extract_strided_slice %75 {offsets = [0, 0], sizes = [8, 32], strides = [1, 1]} : vector<8x64xf32> to vector<8x32xf32>
    %77 = vector.extract_strided_slice %75 {offsets = [0, 32], sizes = [8, 32], strides = [1, 1]} : vector<8x64xf32> to vector<8x32xf32>
    %78 = vector.extract_strided_slice %69 {offsets = [0, 64], sizes = [8, 32], strides = [1, 1]} : vector<8x128xf32> to vector<8x32xf32>
    %79 = math.tanh %78 : vector<8x32xf32>
    %80 = arith.mulf %77, %58 : vector<8x32xf32>
    %81 = arith.mulf %76, %79 : vector<8x32xf32>
    %82 = arith.addf %80, %81 : vector<8x32xf32>
    %83 = math.tanh %82 : vector<8x32xf32>
    %84 = vector.extract_strided_slice %69 {offsets = [0, 96], sizes = [8, 32], strides = [1, 1]} : vector<8x128xf32> to vector<8x32xf32>
    %85 = arith.negf %84 : vector<8x32xf32>
    %86 = math.exp %85 : vector<8x32xf32>
    %cst_27 = arith.constant 1.000000e+00 : f32
    %87 = vector.broadcast %cst_27 : f32 to vector<8x32xf32>
    %88 = arith.addf %87, %86 : vector<8x32xf32>
    %89 = arith.divf %87, %88 : vector<8x32xf32>
    %90 = arith.mulf %89, %83 : vector<8x32xf32>
    %91 = vector.extract_strided_slice %13 {offsets = [24, 0], sizes = [8, 128], strides = [1, 1]} : vector<64x128xf32> to vector<8x128xf32>
    %cst_28 = arith.constant dense<0.000000e+00> : vector<8x128xf32>
    %92 = tpu.matmul %90, %14, %cst_28 {dimension_numbers = #tpu.dot_dimension_numbers<[1], [0], [0], [1], [0, 0, 1, 1], [], []>} : vector<8x32xf32>, vector<32x128xf32>, vector<8x128xf32> -> vector<8x128xf32>
    %93 = arith.addf %91, %92 : vector<8x128xf32>
    %94 = vector.extract_strided_slice %93 {offsets = [0, 0], sizes = [8, 64], strides = [1, 1]} : vector<8x128xf32> to vector<8x64xf32>
    %95 = arith.negf %94 : vector<8x64xf32>
    %96 = math.exp %95 : vector<8x64xf32>
    %cst_29 = arith.constant 1.000000e+00 : f32
    %97 = vector.broadcast %cst_29 : f32 to vector<8x64xf32>
    %98 = arith.addf %97, %96 : vector<8x64xf32>
    %99 = arith.divf %97, %98 : vector<8x64xf32>
    %100 = vector.extract_strided_slice %99 {offsets = [0, 0], sizes = [8, 32], strides = [1, 1]} : vector<8x64xf32> to vector<8x32xf32>
    %101 = vector.extract_strided_slice %99 {offsets = [0, 32], sizes = [8, 32], strides = [1, 1]} : vector<8x64xf32> to vector<8x32xf32>
    %102 = vector.extract_strided_slice %93 {offsets = [0, 64], sizes = [8, 32], strides = [1, 1]} : vector<8x128xf32> to vector<8x32xf32>
    %103 = math.tanh %102 : vector<8x32xf32>
    %104 = arith.mulf %101, %82 : vector<8x32xf32>
    %105 = arith.mulf %100, %103 : vector<8x32xf32>
    %106 = arith.addf %104, %105 : vector<8x32xf32>
    %107 = math.tanh %106 : vector<8x32xf32>
    %108 = vector.extract_strided_slice %93 {offsets = [0, 96], sizes = [8, 32], strides = [1, 1]} : vector<8x128xf32> to vector<8x32xf32>
    %109 = arith.negf %108 : vector<8x32xf32>
    %110 = math.exp %109 : vector<8x32xf32>
    %cst_30 = arith.constant 1.000000e+00 : f32
    %111 = vector.broadcast %cst_30 : f32 to vector<8x32xf32>
    %112 = arith.addf %111, %110 : vector<8x32xf32>
    %113 = arith.divf %111, %112 : vector<8x32xf32>
    %114 = arith.mulf %113, %107 : vector<8x32xf32>
    %115 = vector.extract_strided_slice %13 {offsets = [32, 0], sizes = [8, 128], strides = [1, 1]} : vector<64x128xf32> to vector<8x128xf32>
    %cst_31 = arith.constant dense<0.000000e+00> : vector<8x128xf32>
    %116 = tpu.matmul %114, %14, %cst_31 {dimension_numbers = #tpu.dot_dimension_numbers<[1], [0], [0], [1], [0, 0, 1, 1], [], []>} : vector<8x32xf32>, vector<32x128xf32>, vector<8x128xf32> -> vector<8x128xf32>
    %117 = arith.addf %115, %116 : vector<8x128xf32>
    %118 = vector.extract_strided_slice %117 {offsets = [0, 0], sizes = [8, 64], strides = [1, 1]} : vector<8x128xf32> to vector<8x64xf32>
    %119 = arith.negf %118 : vector<8x64xf32>
    %120 = math.exp %119 : vector<8x64xf32>
    %cst_32 = arith.constant 1.000000e+00 : f32
    %121 = vector.broadcast %cst_32 : f32 to vector<8x64xf32>
    %122 = arith.addf %121, %120 : vector<8x64xf32>
    %123 = arith.divf %121, %122 : vector<8x64xf32>
    %124 = vector.extract_strided_slice %123 {offsets = [0, 0], sizes = [8, 32], strides = [1, 1]} : vector<8x64xf32> to vector<8x32xf32>
    %125 = vector.extract_strided_slice %123 {offsets = [0, 32], sizes = [8, 32], strides = [1, 1]} : vector<8x64xf32> to vector<8x32xf32>
    %126 = vector.extract_strided_slice %117 {offsets = [0, 64], sizes = [8, 32], strides = [1, 1]} : vector<8x128xf32> to vector<8x32xf32>
    %127 = math.tanh %126 : vector<8x32xf32>
    %128 = arith.mulf %125, %106 : vector<8x32xf32>
    %129 = arith.mulf %124, %127 : vector<8x32xf32>
    %130 = arith.addf %128, %129 : vector<8x32xf32>
    %131 = math.tanh %130 : vector<8x32xf32>
    %132 = vector.extract_strided_slice %117 {offsets = [0, 96], sizes = [8, 32], strides = [1, 1]} : vector<8x128xf32> to vector<8x32xf32>
    %133 = arith.negf %132 : vector<8x32xf32>
    %134 = math.exp %133 : vector<8x32xf32>
    %cst_33 = arith.constant 1.000000e+00 : f32
    %135 = vector.broadcast %cst_33 : f32 to vector<8x32xf32>
    %136 = arith.addf %135, %134 : vector<8x32xf32>
    %137 = arith.divf %135, %136 : vector<8x32xf32>
    %138 = arith.mulf %137, %131 : vector<8x32xf32>
    %139 = vector.extract_strided_slice %13 {offsets = [40, 0], sizes = [8, 128], strides = [1, 1]} : vector<64x128xf32> to vector<8x128xf32>
    %cst_34 = arith.constant dense<0.000000e+00> : vector<8x128xf32>
    %140 = tpu.matmul %138, %14, %cst_34 {dimension_numbers = #tpu.dot_dimension_numbers<[1], [0], [0], [1], [0, 0, 1, 1], [], []>} : vector<8x32xf32>, vector<32x128xf32>, vector<8x128xf32> -> vector<8x128xf32>
    %141 = arith.addf %139, %140 : vector<8x128xf32>
    %142 = vector.extract_strided_slice %141 {offsets = [0, 0], sizes = [8, 64], strides = [1, 1]} : vector<8x128xf32> to vector<8x64xf32>
    %143 = arith.negf %142 : vector<8x64xf32>
    %144 = math.exp %143 : vector<8x64xf32>
    %cst_35 = arith.constant 1.000000e+00 : f32
    %145 = vector.broadcast %cst_35 : f32 to vector<8x64xf32>
    %146 = arith.addf %145, %144 : vector<8x64xf32>
    %147 = arith.divf %145, %146 : vector<8x64xf32>
    %148 = vector.extract_strided_slice %147 {offsets = [0, 0], sizes = [8, 32], strides = [1, 1]} : vector<8x64xf32> to vector<8x32xf32>
    %149 = vector.extract_strided_slice %147 {offsets = [0, 32], sizes = [8, 32], strides = [1, 1]} : vector<8x64xf32> to vector<8x32xf32>
    %150 = vector.extract_strided_slice %141 {offsets = [0, 64], sizes = [8, 32], strides = [1, 1]} : vector<8x128xf32> to vector<8x32xf32>
    %151 = math.tanh %150 : vector<8x32xf32>
    %152 = arith.mulf %149, %130 : vector<8x32xf32>
    %153 = arith.mulf %148, %151 : vector<8x32xf32>
    %154 = arith.addf %152, %153 : vector<8x32xf32>
    %155 = math.tanh %154 : vector<8x32xf32>
    %156 = vector.extract_strided_slice %141 {offsets = [0, 96], sizes = [8, 32], strides = [1, 1]} : vector<8x128xf32> to vector<8x32xf32>
    %157 = arith.negf %156 : vector<8x32xf32>
    %158 = math.exp %157 : vector<8x32xf32>
    %cst_36 = arith.constant 1.000000e+00 : f32
    %159 = vector.broadcast %cst_36 : f32 to vector<8x32xf32>
    %160 = arith.addf %159, %158 : vector<8x32xf32>
    %161 = arith.divf %159, %160 : vector<8x32xf32>
    %162 = arith.mulf %161, %155 : vector<8x32xf32>
    %163 = vector.extract_strided_slice %13 {offsets = [48, 0], sizes = [8, 128], strides = [1, 1]} : vector<64x128xf32> to vector<8x128xf32>
    %cst_37 = arith.constant dense<0.000000e+00> : vector<8x128xf32>
    %164 = tpu.matmul %162, %14, %cst_37 {dimension_numbers = #tpu.dot_dimension_numbers<[1], [0], [0], [1], [0, 0, 1, 1], [], []>} : vector<8x32xf32>, vector<32x128xf32>, vector<8x128xf32> -> vector<8x128xf32>
    %165 = arith.addf %163, %164 : vector<8x128xf32>
    %166 = vector.extract_strided_slice %165 {offsets = [0, 0], sizes = [8, 64], strides = [1, 1]} : vector<8x128xf32> to vector<8x64xf32>
    %167 = arith.negf %166 : vector<8x64xf32>
    %168 = math.exp %167 : vector<8x64xf32>
    %cst_38 = arith.constant 1.000000e+00 : f32
    %169 = vector.broadcast %cst_38 : f32 to vector<8x64xf32>
    %170 = arith.addf %169, %168 : vector<8x64xf32>
    %171 = arith.divf %169, %170 : vector<8x64xf32>
    %172 = vector.extract_strided_slice %171 {offsets = [0, 0], sizes = [8, 32], strides = [1, 1]} : vector<8x64xf32> to vector<8x32xf32>
    %173 = vector.extract_strided_slice %171 {offsets = [0, 32], sizes = [8, 32], strides = [1, 1]} : vector<8x64xf32> to vector<8x32xf32>
    %174 = vector.extract_strided_slice %165 {offsets = [0, 64], sizes = [8, 32], strides = [1, 1]} : vector<8x128xf32> to vector<8x32xf32>
    %175 = math.tanh %174 : vector<8x32xf32>
    %176 = arith.mulf %173, %154 : vector<8x32xf32>
    %177 = arith.mulf %172, %175 : vector<8x32xf32>
    %178 = arith.addf %176, %177 : vector<8x32xf32>
    %179 = math.tanh %178 : vector<8x32xf32>
    %180 = vector.extract_strided_slice %165 {offsets = [0, 96], sizes = [8, 32], strides = [1, 1]} : vector<8x128xf32> to vector<8x32xf32>
    %181 = arith.negf %180 : vector<8x32xf32>
    %182 = math.exp %181 : vector<8x32xf32>
    %cst_39 = arith.constant 1.000000e+00 : f32
    %183 = vector.broadcast %cst_39 : f32 to vector<8x32xf32>
    %184 = arith.addf %183, %182 : vector<8x32xf32>
    %185 = arith.divf %183, %184 : vector<8x32xf32>
    %186 = arith.mulf %185, %179 : vector<8x32xf32>
    %187 = vector.extract_strided_slice %13 {offsets = [56, 0], sizes = [8, 128], strides = [1, 1]} : vector<64x128xf32> to vector<8x128xf32>
    %cst_40 = arith.constant dense<0.000000e+00> : vector<8x128xf32>
    %188 = tpu.matmul %186, %14, %cst_40 {dimension_numbers = #tpu.dot_dimension_numbers<[1], [0], [0], [1], [0, 0, 1, 1], [], []>} : vector<8x32xf32>, vector<32x128xf32>, vector<8x128xf32> -> vector<8x128xf32>
    %189 = arith.addf %187, %188 : vector<8x128xf32>
    %190 = vector.extract_strided_slice %189 {offsets = [0, 0], sizes = [8, 64], strides = [1, 1]} : vector<8x128xf32> to vector<8x64xf32>
    %191 = arith.negf %190 : vector<8x64xf32>
    %192 = math.exp %191 : vector<8x64xf32>
    %cst_41 = arith.constant 1.000000e+00 : f32
    %193 = vector.broadcast %cst_41 : f32 to vector<8x64xf32>
    %194 = arith.addf %193, %192 : vector<8x64xf32>
    %195 = arith.divf %193, %194 : vector<8x64xf32>
    %196 = vector.extract_strided_slice %195 {offsets = [0, 0], sizes = [8, 32], strides = [1, 1]} : vector<8x64xf32> to vector<8x32xf32>
    %197 = vector.extract_strided_slice %195 {offsets = [0, 32], sizes = [8, 32], strides = [1, 1]} : vector<8x64xf32> to vector<8x32xf32>
    %198 = vector.extract_strided_slice %189 {offsets = [0, 64], sizes = [8, 32], strides = [1, 1]} : vector<8x128xf32> to vector<8x32xf32>
    %199 = math.tanh %198 : vector<8x32xf32>
    %200 = arith.mulf %197, %178 : vector<8x32xf32>
    %201 = arith.mulf %196, %199 : vector<8x32xf32>
    %202 = arith.addf %200, %201 : vector<8x32xf32>
    %203 = math.tanh %202 : vector<8x32xf32>
    %204 = vector.extract_strided_slice %189 {offsets = [0, 96], sizes = [8, 32], strides = [1, 1]} : vector<8x128xf32> to vector<8x32xf32>
    %205 = arith.negf %204 : vector<8x32xf32>
    %206 = math.exp %205 : vector<8x32xf32>
    %cst_42 = arith.constant 1.000000e+00 : f32
    %207 = vector.broadcast %cst_42 : f32 to vector<8x32xf32>
    %208 = arith.addf %207, %206 : vector<8x32xf32>
    %209 = arith.divf %207, %208 : vector<8x32xf32>
    %210 = arith.mulf %209, %203 : vector<8x32xf32>
    %c0_43 = arith.constant 0 : index
    %c0_44 = arith.constant 0 : index
    %c0_45 = arith.constant 0 : index
    %211 = vector.load %arg8[%c0_43, %c0_44, %c0_45] : memref<2x8x32xf32, #tpu.memory_space<vmem>>, vector<1x8x32xf32>
    %212 = vector.shape_cast %211 : vector<1x8x32xf32> to vector<8x32xf32>
    %213 = vector.shape_cast %210 : vector<8x32xf32> to vector<1x8x32xf32>
    tpu.vector_store %arg8[%c0_43, %c0_44, %c0_45], %213 {strides = array<i32>} : memref<2x8x32xf32, #tpu.memory_space<vmem>>, vector<1x8x32xf32>,
    %c1_46 = arith.constant 1 : index
    %c0_47 = arith.constant 0 : index
    %c0_48 = arith.constant 0 : index
    %214 = vector.load %arg8[%c1_46, %c0_47, %c0_48] : memref<2x8x32xf32, #tpu.memory_space<vmem>>, vector<1x8x32xf32>
    %215 = vector.shape_cast %214 : vector<1x8x32xf32> to vector<8x32xf32>
    %216 = vector.shape_cast %202 : vector<8x32xf32> to vector<1x8x32xf32>
    tpu.vector_store %arg8[%c1_46, %c0_47, %c0_48], %216 {strides = array<i32>} : memref<2x8x32xf32, #tpu.memory_space<vmem>>, vector<1x8x32xf32>,
    %217 = tpu.concatenate %42, %66, %90, %114, %138, %162, %186, %210 in 0 : vector<8x32xf32>, vector<8x32xf32>, vector<8x32xf32>, vector<8x32xf32>, vector<8x32xf32>, vector<8x32xf32>, vector<8x32xf32>, vector<8x32xf32> -> vector<64x32xf32>
    %c0_49 = arith.constant 0 : index
    %c0_50 = arith.constant 0 : index
    %218 = vector.load %arg5[%c0_49, %c0_50] : memref<32x128xf32, #tpu.memory_space<vmem>>, vector<32x128xf32>
    %cst_51 = arith.constant dense<0.000000e+00> : vector<64x128xf32>
    %219 = tpu.matmul %217, %218, %cst_51 {dimension_numbers = #tpu.dot_dimension_numbers<[1], [0], [0], [1], [0, 0, 1, 1], [], []>} : vector<64x32xf32>, vector<32x128xf32>, vector<64x128xf32> -> vector<64x128xf32>
    %220 = vector.broadcast %2 : vector<1x128xf32> to vector<64x128xf32>
    %221 = arith.addf %219, %220 : vector<64x128xf32>
    %c0_52 = arith.constant 0 : index
    %c0_53 = arith.constant 0 : index
    %222 = vector.load %arg7[%c0_52, %c0_53] : memref<64x128xf32, #tpu.memory_space<vmem>>, vector<64x128xf32>
    tpu.vector_store %arg7[%c0_52, %c0_53], %221 {strides = array<i32>} : memref<64x128xf32, #tpu.memory_space<vmem>>, vector<64x128xf32>,
    return
  }
}

</mosaic_0001>

<llo_original>
// kernel: tpu_custom_call.1
$region0: #{tpu_custom_call.1}
  #allocation0 [shape = 'u32[]', space=smem, size = 0x4, offset = 0x4, fixed_abs, tag = 'smem constant byte address 0x4 - core index']
  #allocation1 [shape = 'u32[144,128]{1,0:T(1,128)}', space=vmem, size = 0x12000, scoped, tag = 'internal scratch']
  %s0 = inlined_call_operand.vmem [shape: f32[64,16], index: 0, kind: input, shape index: {}]
  %s1 = inlined_call_operand.hbm [shape: f32[2,8,32], index: 1, kind: input, shape index: {}]
  %s2 = inlined_call_operand.hbm [shape: f32[16,64], index: 2, kind: input, shape index: {}]
  %s3 = inlined_call_operand.vmem [shape: f32[64,128], index: 3, kind: input, shape index: {}]
  %s4 = inlined_call_operand.hbm [shape: f32[32,128], index: 4, kind: input, shape index: {}]
  %s5 = inlined_call_operand.vmem [shape: f32[32,128], index: 5, kind: input, shape index: {}]
  %s6 = inlined_call_operand.vmem [shape: f32[3,128], index: 6, kind: input, shape index: {}]
  %s7 = inlined_call_operand.hbm [shape: f32[64,128], index: 7, kind: output, shape index: {0}]
  %s8 = inlined_call_operand.hbm [shape: f32[2,8,32], index: 8, kind: output, shape index: {1}]
  %9 = xla_tuple %s7, %s8
  %s10 = sld [smem:[#allocation0]]
  $region58: #{tpu_custom_call.1} parent=0
    _
  %s12 = ssub.s32 1, %s10
  %s13 = scalar_select 0, %s12, %s10
  $region1: #{tpu_custom_call.1} parent=0
    #allocation2 [shape = 'u8[8192]{0}', space=vmem, size = 0x2000, scoped, tag = 'input window, operand 1, single buffered']
    #allocation3 [shape = 's32[1]{0}', space=sflag, size = 0x4, scoped, tag = 'scoped memory for tpu_custom_call.1']
    #allocation4 [shape = 's32[1]{0}', space=sflag, size = 0x4, scoped, tag = 'scoped memory for tpu_custom_call.1']
    #allocation5 [shape = 'u8[8192]{0}', space=vmem, size = 0x2000, scoped, tag = 'input window, operand 2, single buffered']
    #allocation6 [shape = 's32[1]{0}', space=sflag, size = 0x4, scoped, tag = 'scoped memory for tpu_custom_call.1']
    #allocation7 [shape = 'u8[16384]{0}', space=vmem, size = 0x4000, scoped, tag = 'input window, operand 4, single buffered']
    #allocation8 [shape = 'u8[32768]{0}', space=vmem, size = 0x8000, scoped, tag = 'output window, operand 0, single buffered']
    #allocation9 [shape = 'u8[8192]{0}', space=vmem, size = 0x2000, scoped, tag = 'output window, operand 1, single buffered']
    #allocation10 [shape = 's32[1]{0}', space=sflag, size = 0x4, scoped, tag = 'scoped memory for tpu_custom_call.1']
    %14 = vsyncpa [#allocation3], 0
    %15 = vsyncpa [#allocation6], 0
    %16 = vsyncpa [#allocation4], 0
    %17 = vsyncpa [#allocation10], 0
    // Predicated region
    $region2: #{tpu_custom_call.1} parent=1 // pred_check
      _
    $region3: #{tpu_custom_call.1} parent=1 // pred_check_branch
      %19 = sbr.rel (0) target = $region5
    $region4: #{tpu_custom_call.1} parent=1 // pred_region
      _
    $region5: #{tpu_custom_call.1} parent=1 // pred_fallthru
      _
    // Predicated region
    $region6: #{tpu_custom_call.1} parent=1 // pred_check
      _
    $region7: #{tpu_custom_call.1} parent=1 // pred_check_branch
      %21 = sbr.rel (0) target = $region9
    $region8: #{tpu_custom_call.1} parent=1 // pred_region
      %s23 = ssub.s32 256, 256
      %24 = vsyncadd [#allocation3], %s23
      %s25 = sshll.u32 [#allocation2], 4
      %s26 = int_to_ptr.vmem [resolvable:$true] %s25
      %31 = dma.hbm_to_vmem [thread:$0]  %s1, 256, %s26, [#allocation3], 128, 128, 8
    $region9: #{tpu_custom_call.1} parent=1 // pred_fallthru
      _
    // Predicated region
    $region10: #{tpu_custom_call.1} parent=1 // pred_check
      _
    $region11: #{tpu_custom_call.1} parent=1 // pred_check_branch
      %33 = sbr.rel (0) target = $region13
    $region12: #{tpu_custom_call.1} parent=1 // pred_region
      %s35 = ssub.s32 256, 256
      %36 = vsyncadd [#allocation6], %s35
      %s37 = sshll.u32 [#allocation5], 4
      %s38 = int_to_ptr.vmem [resolvable:$true] %s37
      %43 = dma.hbm_to_vmem [thread:$0]  %s2, 256, %s38, [#allocation6], 128, 128, 8
    $region13: #{tpu_custom_call.1} parent=1 // pred_fallthru
      _
    // Predicated region
    $region14: #{tpu_custom_call.1} parent=1 // pred_check
      _
    $region15: #{tpu_custom_call.1} parent=1 // pred_check_branch
      %45 = sbr.rel (0) target = $region17
    $region16: #{tpu_custom_call.1} parent=1 // pred_region
      _
    $region17: #{tpu_custom_call.1} parent=1 // pred_fallthru
      _
    // Predicated region
    $region18: #{tpu_custom_call.1} parent=1 // pred_check
      _
    $region19: #{tpu_custom_call.1} parent=1 // pred_check_branch
      %47 = sbr.rel (0) target = $region21
    $region20: #{tpu_custom_call.1} parent=1 // pred_region
      %s49 = ssub.s32 512, 512
      %50 = vsyncadd [#allocation6], %s49
      %s51 = sshll.u32 [#allocation7], 4
      %s52 = int_to_ptr.vmem [resolvable:$true] %s51
      %57 = dma.hbm_to_vmem [thread:$0]  %s4, 512, %s52, [#allocation6], 128, 128, 8
    $region21: #{tpu_custom_call.1} parent=1 // pred_fallthru
      _
    // Predicated region
    $region22: #{tpu_custom_call.1} parent=1 // pred_check
      _
    $region23: #{tpu_custom_call.1} parent=1 // pred_check_branch
      %59 = sbr.rel (0) target = $region25
    $region24: #{tpu_custom_call.1} parent=1 // pred_region
      _
    $region25: #{tpu_custom_call.1} parent=1 // pred_fallthru
      _
    // Predicated region
    $region26: #{tpu_custom_call.1} parent=1 // pred_check
      _
    $region27: #{tpu_custom_call.1} parent=1 // pred_check_branch
      %61 = sbr.rel (0) target = $region29
    $region28: #{tpu_custom_call.1} parent=1 // pred_region
      _
    $region29: #{tpu_custom_call.1} parent=1 // pred_fallthru
      _
    // Predicated region
    $region30: #{tpu_custom_call.1} parent=1 // pred_check
      _
    $region31: #{tpu_custom_call.1} parent=1 // pred_check_branch
      %63 = sbr.rel (0) target = $region33
    $region32: #{tpu_custom_call.1} parent=1 // pred_region
      %64 = dma.done [#allocation3], 256
    $region33: #{tpu_custom_call.1} parent=1 // pred_fallthru
      _
    // Predicated region
    $region34: #{tpu_custom_call.1} parent=1 // pred_check
      _
    $region35: #{tpu_custom_call.1} parent=1 // pred_check_branch
      %66 = sbr.rel (0) target = $region37
    $region36: #{tpu_custom_call.1} parent=1 // pred_region
      %67 = dma.done [#allocation6], 256
    $region37: #{tpu_custom_call.1} parent=1 // pred_fallthru
      _
    // Predicated region
    $region38: #{tpu_custom_call.1} parent=1 // pred_check
      _
    $region39: #{tpu_custom_call.1} parent=1 // pred_check_branch
      %69 = sbr.rel (0) target = $region41
    $region40: #{tpu_custom_call.1} parent=1 // pred_region
      %70 = dma.done [#allocation6], 512
    $region41: #{tpu_custom_call.1} parent=1 // pred_fallthru
      _
    %v71 = vld [vmem:[%s6] sm:$0x1]
    %v72 = vld [vmem:[%s6 + $0x1] sm:$0x1]
    %v73 = vld [vmem:[%s6 + $0x2] sm:$0x1]
    %v74 = vld [vmem:[%s0] sm:$0xff]
    %v75 = vld [vmem:[%s0 + $0x8] sm:$0xff]
    %v76 = vld [vmem:[%s0 + $0x10] sm:$0xff]
    %v77 = vld [vmem:[%s0 + $0x18] sm:$0xff]
    %v78 = vld [vmem:[%s0 + $0x20] sm:$0xff]
    %v79 = vld [vmem:[%s0 + $0x28] sm:$0xff]
    %v80 = vld [vmem:[%s0 + $0x30] sm:$0xff]
    %v81 = vld [vmem:[%s0 + $0x38] sm:$0xff]
    %v82 = vld [vmem:[#allocation5] sm:$0xff]
    %v83 = vld [vmem:[#allocation5 + $0x8] sm:$0xff]
    %v84 = vlaneseq
    %v85 = vshrl.u32 %v84, 7
    %v86 = vsub.s32 0, %v85
    %v87 = vrot.slane %v71, %v86
    %vm88 = vcmask 130048
    %v90 = vsel %vm88, %v74, 0
    %v93 = vsel %vm88, %v75, 0
    %v96 = vsel %vm88, %v76, 0
    %v99 = vsel %vm88, %v77, 0
    %v102 = vsel %vm88, %v78, 0
    %v105 = vsel %vm88, %v79, 0
    %v108 = vsel %vm88, %v80, 0
    %v111 = vsel %vm88, %v81, 0
    %113 = vmatprep.subr.mxu0 0.0
    %114 = vmatpush1.msra.mxu0 %v82
    %115 = vmatprep.subr.mxu0 0.0
    %116 = vmatpush1.msra.mxu0 %v83
    %117 = vmatprep.subr.mxu0 0.0
    %118 = vmatpush1.msra.mxu0 0.0
    %119 = vmatprep.subr.mxu0 0.0
    %120 = vmatpush1.msra.mxu0 0.0
    %121 = vmatprep.subr.mxu0 0.0
    %122 = vmatpush1.msra.mxu0 0.0
    %123 = vmatprep.subr.mxu0 0.0
    %124 = vmatpush1.msra.mxu0 0.0
    %125 = vmatprep.subr.mxu0 0.0
    %126 = vmatpush1.msra.mxu0 0.0
    %127 = vmatprep.subr.mxu0 0.0
    %128 = vmatpush1.msra.mxu0 0.0
    %129 = vmatprep.subr.mxu0 0.0
    %130 = vmatpush1.msra.mxu0 0.0
    %131 = vmatprep.subr.mxu0 0.0
    %132 = vmatpush1.msra.mxu0 0.0
    %133 = vmatprep.subr.mxu0 0.0
    %134 = vmatpush1.msra.mxu0 0.0
    %135 = vmatprep.subr.mxu0 0.0
    %136 = vmatpush1.msra.mxu0 0.0
    %137 = vmatprep.subr.mxu0 0.0
    %138 = vmatpush1.msra.mxu0 0.0
    %139 = vmatprep.subr.mxu0 0.0
    %140 = vmatpush1.msra.mxu0 0.0
    %141 = vmatprep.subr.mxu0 0.0
    %142 = vmatpush1.msra.mxu0 0.0
    %143 = vmatprep.subr.mxu0 0.0
    %144 = vmatpush1.msra.mxu0 0.0
    %145 = vmatprep.subr.mxu0 0.0
    %146 = vmatpush1.msra.mxu0 0.0
    %147 = vmatprep.subr.mxu0 0.0
    %148 = vmatpush1.msra.mxu0 0.0
    %149 = vmatprep.subr.mxu0 0.0
    %150 = vmatpush1.msra.mxu0 0.0
    %151 = vmatprep.subr.mxu0 0.0
    %152 = vmatpush1.msra.mxu0 0.0
    %153 = vmatprep.subr.mxu0 0.0
    %154 = vmatpush1.msra.mxu0 0.0
    %155 = vmatprep.subr.mxu0 0.0
    %156 = vmatpush1.msra.mxu0 0.0
    %157 = vmatprep.subr.mxu0 0.0
    %158 = vmatpush1.msra.mxu0 0.0
    %159 = vmatprep.subr.mxu0 0.0
    %160 = vmatpush1.msra.mxu0 0.0
    %161 = vmatprep.subr.mxu0 0.0
    %162 = vmatpush1.msra.mxu0 0.0
    %163 = vmatprep.subr.mxu0 0.0
    %164 = vmatpush1.msra.mxu0 0.0
    %165 = vmatprep.subr.mxu0 0.0
    %166 = vmatpush1.msra.mxu0 0.0
    %167 = vmatprep.subr.mxu0 0.0
    %168 = vmatpush1.msra.mxu0 0.0
    %169 = vmatprep.subr.mxu0 0.0
    %170 = vmatpush1.msra.mxu0 0.0
    %171 = vmatprep.subr.mxu0 0.0
    %172 = vmatpush1.msra.mxu0 0.0
    %173 = vmatprep.subr.mxu0 0.0
    %174 = vmatpush1.msra.mxu0 0.0
    %175 = vmatprep.subr.mxu0 0.0
    %176 = vmatpush1.msra.mxu0 0.0
    %177 = vmatprep.mubr.f32.mxu0 0.0
    %178 = vmatmul.mubr.f32.gmra.mrb[0].mxu0 %v90
    %v179 = vpop.f32.mrb[0].mxu0
    %v180 = vadd.f32 %v87, %v179
    %v181 = vpop.f32.mrb[0].mxu0
    %182 = vmatprep.mubr.f32.mxu0 0.0
    %183 = vmatmul.mubr.f32.gmra.mrb[0].mxu0 %v93
    %v184 = vpop.f32.mrb[0].mxu0
    %v185 = vadd.f32 %v87, %v184
    %v186 = vpop.f32.mrb[0].mxu0
    %187 = vmatprep.mubr.f32.mxu0 0.0
    %188 = vmatmul.mubr.f32.gmra.mrb[0].mxu0 %v96
    %v189 = vpop.f32.mrb[0].mxu0
    %v190 = vadd.f32 %v87, %v189
    %v191 = vpop.f32.mrb[0].mxu0
    %192 = vmatprep.mubr.f32.mxu0 0.0
    %193 = vmatmul.mubr.f32.gmra.mrb[0].mxu0 %v99
    %v194 = vpop.f32.mrb[0].mxu0
    %v195 = vadd.f32 %v87, %v194
    %v196 = vpop.f32.mrb[0].mxu0
    %197 = vmatprep.mubr.f32.mxu0 0.0
    %198 = vmatmul.mubr.f32.gmra.mrb[0].mxu0 %v102
    %v199 = vpop.f32.mrb[0].mxu0
    %v200 = vadd.f32 %v87, %v199
    %v201 = vpop.f32.mrb[0].mxu0
    %202 = vmatprep.mubr.f32.mxu0 0.0
    %203 = vmatmul.mubr.f32.gmra.mrb[0].mxu0 %v105
    %v204 = vpop.f32.mrb[0].mxu0
    %v205 = vadd.f32 %v87, %v204
    %v206 = vpop.f32.mrb[0].mxu0
    %207 = vmatprep.mubr.f32.mxu0 0.0
    %208 = vmatmul.mubr.f32.gmra.mrb[0].mxu0 %v108
    %v209 = vpop.f32.mrb[0].mxu0
    %v210 = vadd.f32 %v87, %v209
    %v211 = vpop.f32.mrb[0].mxu0
    %212 = vmatprep.mubr.f32.mxu0 0.0
    %213 = vmatmul.mubr.f32.gmra.mrb[0].mxu0 %v111
    %v214 = vpop.f32.mrb[0].mxu0
    %v215 = vadd.f32 %v87, %v214
    %v216 = vpop.f32.mrb[0].mxu0
    %217 = vdwg.mxu0
    %v218 = vmax.f32 %v180, 0.0
    %v219 = vmax.f32 %v185, 0.0
    %v220 = vmax.f32 %v190, 0.0
    %v221 = vmax.f32 %v195, 0.0
    %v222 = vmax.f32 %v200, 0.0
    %v223 = vmax.f32 %v205, 0.0
    %v224 = vmax.f32 %v210, 0.0
    %v225 = vmax.f32 %v215, 0.0
    %v226 = vld [vmem:[%s3] sm:$0xff]
    %v227 = vld [vmem:[%s3 + $0x8] sm:$0xff]
    %v228 = vld [vmem:[%s3 + $0x10] sm:$0xff]
    %v229 = vld [vmem:[%s3 + $0x18] sm:$0xff]
    %v230 = vld [vmem:[%s3 + $0x20] sm:$0xff]
    %v231 = vld [vmem:[%s3 + $0x28] sm:$0xff]
    %v232 = vld [vmem:[%s3 + $0x30] sm:$0xff]
    %v233 = vld [vmem:[%s3 + $0x38] sm:$0xff]
    %v234 = vlaneseq
    %v235 = vshrl.u32 %v234, 7
    %v236 = vsub.s32 0, %v235
    %v237 = vrot.slane %v72, %v236
    %vm238 = vcmask 523264
    %v240 = vsel %vm238, %v218, 0
    %v243 = vsel %vm238, %v219, 0
    %v246 = vsel %vm238, %v220, 0
    %v249 = vsel %vm238, %v221, 0
    %v252 = vsel %vm238, %v222, 0
    %v255 = vsel %vm238, %v223, 0
    %v258 = vsel %vm238, %v224, 0
    %v261 = vsel %vm238, %v225, 0
    %263 = vmatprep.subr.mxu0 0.0
    %264 = vmatpush1.msra.mxu0 %v226
    %265 = vmatprep.subr.mxu0 0.0
    %266 = vmatpush1.msra.mxu0 %v227
    %267 = vmatprep.subr.mxu0 0.0
    %268 = vmatpush1.msra.mxu0 %v228
    %269 = vmatprep.subr.mxu0 0.0
    %270 = vmatpush1.msra.mxu0 %v229
    %271 = vmatprep.subr.mxu0 0.0
    %272 = vmatpush1.msra.mxu0 %v230
    %273 = vmatprep.subr.mxu0 0.0
    %274 = vmatpush1.msra.mxu0 %v231
    %275 = vmatprep.subr.mxu0 0.0
    %276 = vmatpush1.msra.mxu0 %v232
    %277 = vmatprep.subr.mxu0 0.0
    %278 = vmatpush1.msra.mxu0 %v233
    %279 = vmatprep.subr.mxu0 0.0
    %280 = vmatpush1.msra.mxu0 0.0
    %281 = vmatprep.subr.mxu0 0.0
    %282 = vmatpush1.msra.mxu0 0.0
    %283 = vmatprep.subr.mxu0 0.0
    %284 = vmatpush1.msra.mxu0 0.0
    %285 = vmatprep.subr.mxu0 0.0
    %286 = vmatpush1.msra.mxu0 0.0
    %287 = vmatprep.subr.mxu0 0.0
    %288 = vmatpush1.msra.mxu0 0.0
    %289 = vmatprep.subr.mxu0 0.0
    %290 = vmatpush1.msra.mxu0 0.0
    %291 = vmatprep.subr.mxu0 0.0
    %292 = vmatpush1.msra.mxu0 0.0
    %293 = vmatprep.subr.mxu0 0.0
    %294 = vmatpush1.msra.mxu0 0.0
    %295 = vmatprep.subr.mxu0 0.0
    %296 = vmatpush1.msra.mxu0 0.0
    %297 = vmatprep.subr.mxu0 0.0
    %298 = vmatpush1.msra.mxu0 0.0
    %299 = vmatprep.subr.mxu0 0.0
    %300 = vmatpush1.msra.mxu0 0.0
    %301 = vmatprep.subr.mxu0 0.0
    %302 = vmatpush1.msra.mxu0 0.0
    %303 = vmatprep.subr.mxu0 0.0
    %304 = vmatpush1.msra.mxu0 0.0
    %305 = vmatprep.subr.mxu0 0.0
    %306 = vmatpush1.msra.mxu0 0.0
    %307 = vmatprep.subr.mxu0 0.0
    %308 = vmatpush1.msra.mxu0 0.0
    %309 = vmatprep.subr.mxu0 0.0
    %310 = vmatpush1.msra.mxu0 0.0
    %311 = vmatprep.subr.mxu0 0.0
    %312 = vmatpush1.msra.mxu0 0.0
    %313 = vmatprep.subr.mxu0 0.0
    %314 = vmatpush1.msra.mxu0 0.0
    %315 = vmatprep.subr.mxu0 0.0
    %316 = vmatpush1.msra.mxu0 0.0
    %317 = vmatprep.subr.mxu0 0.0
    %318 = vmatpush1.msra.mxu0 0.0
    %319 = vmatprep.subr.mxu0 0.0
    %320 = vmatpush1.msra.mxu0 0.0
    %321 = vmatprep.subr.mxu0 0.0
    %322 = vmatpush1.msra.mxu0 0.0
    %323 = vmatprep.subr.mxu0 0.0
    %324 = vmatpush1.msra.mxu0 0.0
    %325 = vmatprep.subr.mxu0 0.0
    %326 = vmatpush1.msra.mxu0 0.0
    %327 = vmatprep.mubr.f32.mxu0 0.0
    %328 = vmatmul.mubr.f32.gmra.mrb[0].mxu0 %v240
    %v329 = vpop.f32.mrb[0].mxu0
    %v330 = vadd.f32 %v237, %v329
    %v331 = vpop.f32.mrb[0].mxu0
    %332 = vmatprep.mubr.f32.mxu0 0.0
    %333 = vmatmul.mubr.f32.gmra.mrb[0].mxu0 %v243
    %v334 = vpop.f32.mrb[0].mxu0
    %v335 = vadd.f32 %v237, %v334
    %v336 = vpop.f32.mrb[0].mxu0
    %337 = vmatprep.mubr.f32.mxu0 0.0
    %338 = vmatmul.mubr.f32.gmra.mrb[0].mxu0 %v246
    %v339 = vpop.f32.mrb[0].mxu0
    %v340 = vadd.f32 %v237, %v339
    %v341 = vpop.f32.mrb[0].mxu0
    %342 = vmatprep.mubr.f32.mxu0 0.0
    %343 = vmatmul.mubr.f32.gmra.mrb[0].mxu0 %v249
    %v344 = vpop.f32.mrb[0].mxu0
    %v345 = vadd.f32 %v237, %v344
    %v346 = vpop.f32.mrb[0].mxu0
    %347 = vmatprep.mubr.f32.mxu0 0.0
    %348 = vmatmul.mubr.f32.gmra.mrb[0].mxu0 %v252
    %v349 = vpop.f32.mrb[0].mxu0
    %v350 = vadd.f32 %v237, %v349
    %v351 = vpop.f32.mrb[0].mxu0
    %352 = vmatprep.mubr.f32.mxu0 0.0
    %353 = vmatmul.mubr.f32.gmra.mrb[0].mxu0 %v255
    %v354 = vpop.f32.mrb[0].mxu0
    %v355 = vadd.f32 %v237, %v354
    %v356 = vpop.f32.mrb[0].mxu0
    %357 = vmatprep.mubr.f32.mxu0 0.0
    %358 = vmatmul.mubr.f32.gmra.mrb[0].mxu0 %v258
    %v359 = vpop.f32.mrb[0].mxu0
    %v360 = vadd.f32 %v237, %v359
    %v361 = vpop.f32.mrb[0].mxu0
    %362 = vmatprep.mubr.f32.mxu0 0.0
    %363 = vmatmul.mubr.f32.gmra.mrb[0].mxu0 %v261
    %v364 = vpop.f32.mrb[0].mxu0
    %v365 = vadd.f32 %v237, %v364
    %v366 = vpop.f32.mrb[0].mxu0
    %367 = vdwg.mxu0
    %v368 = vld [vmem:[#allocation7] sm:$0xff]
    %v369 = vld [vmem:[#allocation7 + $0x8] sm:$0xff]
    %v370 = vld [vmem:[#allocation7 + $0x10] sm:$0xff]
    %v371 = vld [vmem:[#allocation7 + $0x18] sm:$0xff]
    %v372 = vld [vmem:[#allocation2] sm:$0xff]
    %s373 = scalar_lea.vmem [#allocation2], 8
    %v374 = vld [vmem:[%s373] sm:$0xff]
    %vm375 = vcmask 261120
    %v377 = vsel %vm375, %v372, 0
    %379 = vmatprep.subr.mxu0 0.0
    %380 = vmatpush1.msra.mxu0 %v368
    %381 = vmatprep.subr.mxu0 0.0
    %382 = vmatpush1.msra.mxu0 %v369
    %383 = vmatprep.subr.mxu0 0.0
    %384 = vmatpush1.msra.mxu0 %v370
    %385 = vmatprep.subr.mxu0 0.0
    %386 = vmatpush1.msra.mxu0 %v371
    %387 = vmatprep.subr.mxu0 0.0
    %388 = vmatpush1.msra.mxu0 0.0
    %389 = vmatprep.subr.mxu0 0.0
    %390 = vmatpush1.msra.mxu0 0.0
    %391 = vmatprep.subr.mxu0 0.0
    %392 = vmatpush1.msra.mxu0 0.0
    %393 = vmatprep.subr.mxu0 0.0
    %394 = vmatpush1.msra.mxu0 0.0
    %395 = vmatprep.subr.mxu0 0.0
    %396 = vmatpush1.msra.mxu0 0.0
    %397 = vmatprep.subr.mxu0 0.0
    %398 = vmatpush1.msra.mxu0 0.0
    %399 = vmatprep.subr.mxu0 0.0
    %400 = vmatpush1.msra.mxu0 0.0
    %401 = vmatprep.subr.mxu0 0.0
    %402 = vmatpush1.msra.mxu0 0.0
    %403 = vmatprep.subr.mxu0 0.0
    %404 = vmatpush1.msra.mxu0 0.0
    %405 = vmatprep.subr.mxu0 0.0
    %406 = vmatpush1.msra.mxu0 0.0
    %407 = vmatprep.subr.mxu0 0.0
    %408 = vmatpush1.msra.mxu0 0.0
    %409 = vmatprep.subr.mxu0 0.0
    %410 = vmatpush1.msra.mxu0 0.0
    %411 = vmatprep.subr.mxu0 0.0
    %412 = vmatpush1.msra.mxu0 0.0
    %413 = vmatprep.subr.mxu0 0.0
    %414 = vmatpush1.msra.mxu0 0.0
    %415 = vmatprep.subr.mxu0 0.0
    %416 = vmatpush1.msra.mxu0 0.0
    %417 = vmatprep.subr.mxu0 0.0
    %418 = vmatpush1.msra.mxu0 0.0
    %419 = vmatprep.subr.mxu0 0.0
    %420 = vmatpush1.msra.mxu0 0.0
    %421 = vmatprep.subr.mxu0 0.0
    %422 = vmatpush1.msra.mxu0 0.0
    %423 = vmatprep.subr.mxu0 0.0
    %424 = vmatpush1.msra.mxu0 0.0
    %425 = vmatprep.subr.mxu0 0.0
    %426 = vmatpush1.msra.mxu0 0.0
    %427 = vmatprep.subr.mxu0 0.0
    %428 = vmatpush1.msra.mxu0 0.0
    %429 = vmatprep.subr.mxu0 0.0
    %430 = vmatpush1.msra.mxu0 0.0
    %431 = vmatprep.subr.mxu0 0.0
    %432 = vmatpush1.msra.mxu0 0.0
    %433 = vmatprep.subr.mxu0 0.0
    %434 = vmatpush1.msra.mxu0 0.0
    %435 = vmatprep.subr.mxu0 0.0
    %436 = vmatpush1.msra.mxu0 0.0
    %437 = vmatprep.subr.mxu0 0.0
    %438 = vmatpush1.msra.mxu0 0.0
    %439 = vmatprep.subr.mxu0 0.0
    %440 = vmatpush1.msra.mxu0 0.0
    %441 = vmatprep.subr.mxu0 0.0
    %442 = vmatpush1.msra.mxu0 0.0
    %443 = vmatprep.mubr.f32.mxu0 0.0
    %444 = vmatmul.mubr.f32.gmra.mrb[0].mxu0 %v377
    %v445 = vpop.f32.mrb[0].mxu0
    %v446 = vadd.f32 0.0, %v445
    %v447 = vpop.f32.mrb[0].mxu0
    %448 = vdwg.mxu0
    %v449 = vadd.f32 %v330, %v446
    %v450 = vxor.u32 %v449, 2147483648
    %v451 = vmul.f32 %v450, 1.442695
    %v452 = vpow.pop %v451
    %v453 = vadd.f32 %v452, 1.0
    %v454 = vrcp.pop %v453
    %v455 = vmul.f32 1.0, %v454
    %v456 = vtanh.pop %v449
    %458 = vrot.lane.b32.xlu0 %v374, 32
    %v459 = vpop.permute.xlu0 %458
    %v461 = vmul.f32 %v455, %v459
    %463 = vrot.lane.b32.xlu0 %v456, 64
    %v464 = vpop.permute.xlu0 %463
    %v466 = vmul.f32 %v455, %v464
    %468 = vrot.lane.b32.xlu0 %v466, 32
    %v469 = vpop.permute.xlu0 %468
    %v471 = vadd.f32 %v461, %v469
    %v472 = vtanh.pop %v471
    %474 = vrot.lane.b32.xlu0 %v472, 64
    %v475 = vpop.permute.xlu0 %474
    %v477 = vmul.f32 %v455, %v475
    %479 = vrot.lane.b32.xlu0 %v477, 32
    %v480 = vpop.permute.xlu0 %479
    %v481 = vsel %vm375, %v480, 0
    %483 = vmatprep.subr.mxu0 0.0
    %484 = vmatpush1.msra.mxu0 %v368
    %485 = vmatprep.subr.mxu0 0.0
    %486 = vmatpush1.msra.mxu0 %v369
    %487 = vmatprep.subr.mxu0 0.0
    %488 = vmatpush1.msra.mxu0 %v370
    %489 = vmatprep.subr.mxu0 0.0
    %490 = vmatpush1.msra.mxu0 %v371
    %491 = vmatprep.subr.mxu0 0.0
    %492 = vmatpush1.msra.mxu0 0.0
    %493 = vmatprep.subr.mxu0 0.0
    %494 = vmatpush1.msra.mxu0 0.0
    %495 = vmatprep.subr.mxu0 0.0
    %496 = vmatpush1.msra.mxu0 0.0
    %497 = vmatprep.subr.mxu0 0.0
    %498 = vmatpush1.msra.mxu0 0.0
    %499 = vmatprep.subr.mxu0 0.0
    %500 = vmatpush1.msra.mxu0 0.0
    %501 = vmatprep.subr.mxu0 0.0
    %502 = vmatpush1.msra.mxu0 0.0
    %503 = vmatprep.subr.mxu0 0.0
    %504 = vmatpush1.msra.mxu0 0.0
    %505 = vmatprep.subr.mxu0 0.0
    %506 = vmatpush1.msra.mxu0 0.0
    %507 = vmatprep.subr.mxu0 0.0
    %508 = vmatpush1.msra.mxu0 0.0
    %509 = vmatprep.subr.mxu0 0.0
    %510 = vmatpush1.msra.mxu0 0.0
    %511 = vmatprep.subr.mxu0 0.0
    %512 = vmatpush1.msra.mxu0 0.0
    %513 = vmatprep.subr.mxu0 0.0
    %514 = vmatpush1.msra.mxu0 0.0
    %515 = vmatprep.subr.mxu0 0.0
    %516 = vmatpush1.msra.mxu0 0.0
    %517 = vmatprep.subr.mxu0 0.0
    %518 = vmatpush1.msra.mxu0 0.0
    %519 = vmatprep.subr.mxu0 0.0
    %520 = vmatpush1.msra.mxu0 0.0
    %521 = vmatprep.subr.mxu0 0.0
    %522 = vmatpush1.msra.mxu0 0.0
    %523 = vmatprep.subr.mxu0 0.0
    %524 = vmatpush1.msra.mxu0 0.0
    %525 = vmatprep.subr.mxu0 0.0
    %526 = vmatpush1.msra.mxu0 0.0
    %527 = vmatprep.subr.mxu0 0.0
    %528 = vmatpush1.msra.mxu0 0.0
    %529 = vmatprep.subr.mxu0 0.0
    %530 = vmatpush1.msra.mxu0 0.0
    %531 = vmatprep.subr.mxu0 0.0
    %532 = vmatpush1.msra.mxu0 0.0
    %533 = vmatprep.subr.mxu0 0.0
    %534 = vmatpush1.msra.mxu0 0.0
    %535 = vmatprep.subr.mxu0 0.0
    %536 = vmatpush1.msra.mxu0 0.0
    %537 = vmatprep.subr.mxu0 0.0
    %538 = vmatpush1.msra.mxu0 0.0
    %539 = vmatprep.subr.mxu0 0.0
    %540 = vmatpush1.msra.mxu0 0.0
    %541 = vmatprep.subr.mxu0 0.0
    %542 = vmatpush1.msra.mxu0 0.0
    %543 = vmatprep.subr.mxu0 0.0
    %544 = vmatpush1.msra.mxu0 0.0
    %545 = vmatprep.subr.mxu0 0.0
    %546 = vmatpush1.msra.mxu0 0.0
    %547 = vmatprep.mubr.f32.mxu0 0.0
    %548 = vmatmul.mubr.f32.gmra.mrb[0].mxu0 %v481
    %v549 = vpop.f32.mrb[0].mxu0
    %v550 = vadd.f32 0.0, %v549
    %v551 = vpop.f32.mrb[0].mxu0
    %552 = vdwg.mxu0
    %v553 = vadd.f32 %v335, %v550
    %v554 = vxor.u32 %v553, 2147483648
    %v555 = vmul.f32 %v554, 1.442695
    %v556 = vpow.pop %v555
    %v557 = vadd.f32 %v556, 1.0
    %v558 = vrcp.pop %v557
    %v559 = vmul.f32 1.0, %v558
    %v560 = vtanh.pop %v553
    %v561 = vmul.f32 %v559, %v471
    %563 = vrot.lane.b32.xlu0 %v560, 64
    %v564 = vpop.permute.xlu0 %563
    %v566 = vmul.f32 %v559, %v564
    %568 = vrot.lane.b32.xlu0 %v566, 32
    %v569 = vpop.permute.xlu0 %568
    %v571 = vadd.f32 %v561, %v569
    %v572 = vtanh.pop %v571
    %574 = vrot.lane.b32.xlu0 %v572, 64
    %v575 = vpop.permute.xlu0 %574
    %v577 = vmul.f32 %v559, %v575
    %579 = vrot.lane.b32.xlu0 %v577, 32
    %v580 = vpop.permute.xlu0 %579
    %v581 = vsel %vm375, %v580, 0
    %583 = vmatprep.subr.mxu0 0.0
    %584 = vmatpush1.msra.mxu0 %v368
    %585 = vmatprep.subr.mxu0 0.0
    %586 = vmatpush1.msra.mxu0 %v369
    %587 = vmatprep.subr.mxu0 0.0
    %588 = vmatpush1.msra.mxu0 %v370
    %589 = vmatprep.subr.mxu0 0.0
    %590 = vmatpush1.msra.mxu0 %v371
    %591 = vmatprep.subr.mxu0 0.0
    %592 = vmatpush1.msra.mxu0 0.0
    %593 = vmatprep.subr.mxu0 0.0
    %594 = vmatpush1.msra.mxu0 0.0
    %595 = vmatprep.subr.mxu0 0.0
    %596 = vmatpush1.msra.mxu0 0.0
    %597 = vmatprep.subr.mxu0 0.0
    %598 = vmatpush1.msra.mxu0 0.0
    %599 = vmatprep.subr.mxu0 0.0
    %600 = vmatpush1.msra.mxu0 0.0
    %601 = vmatprep.subr.mxu0 0.0
    %602 = vmatpush1.msra.mxu0 0.0
    %603 = vmatprep.subr.mxu0 0.0
    %604 = vmatpush1.msra.mxu0 0.0
    %605 = vmatprep.subr.mxu0 0.0
    %606 = vmatpush1.msra.mxu0 0.0
    %607 = vmatprep.subr.mxu0 0.0
    %608 = vmatpush1.msra.mxu0 0.0
    %609 = vmatprep.subr.mxu0 0.0
    %610 = vmatpush1.msra.mxu0 0.0
    %611 = vmatprep.subr.mxu0 0.0
    %612 = vmatpush1.msra.mxu0 0.0
    %613 = vmatprep.subr.mxu0 0.0
    %614 = vmatpush1.msra.mxu0 0.0
    %615 = vmatprep.subr.mxu0 0.0
    %616 = vmatpush1.msra.mxu0 0.0
    %617 = vmatprep.subr.mxu0 0.0
    %618 = vmatpush1.msra.mxu0 0.0
    %619 = vmatprep.subr.mxu0 0.0
    %620 = vmatpush1.msra.mxu0 0.0
    %621 = vmatprep.subr.mxu0 0.0
    %622 = vmatpush1.msra.mxu0 0.0
    %623 = vmatprep.subr.mxu0 0.0
    %624 = vmatpush1.msra.mxu0 0.0
    %625 = vmatprep.subr.mxu0 0.0
    %626 = vmatpush1.msra.mxu0 0.0
    %627 = vmatprep.subr.mxu0 0.0
    %628 = vmatpush1.msra.mxu0 0.0
    %629 = vmatprep.subr.mxu0 0.0
    %630 = vmatpush1.msra.mxu0 0.0
    %631 = vmatprep.subr.mxu0 0.0
    %632 = vmatpush1.msra.mxu0 0.0
    %633 = vmatprep.subr.mxu0 0.0
    %634 = vmatpush1.msra.mxu0 0.0
    %635 = vmatprep.subr.mxu0 0.0
    %636 = vmatpush1.msra.mxu0 0.0
    %637 = vmatprep.subr.mxu0 0.0
    %638 = vmatpush1.msra.mxu0 0.0
    %639 = vmatprep.subr.mxu0 0.0
    %640 = vmatpush1.msra.mxu0 0.0
    %641 = vmatprep.subr.mxu0 0.0
    %642 = vmatpush1.msra.mxu0 0.0
    %643 = vmatprep.subr.mxu0 0.0
    %644 = vmatpush1.msra.mxu0 0.0
    %645 = vmatprep.subr.mxu0 0.0
    %646 = vmatpush1.msra.mxu0 0.0
    %647 = vmatprep.mubr.f32.mxu0 0.0
    %648 = vmatmul.mubr.f32.gmra.mrb[0].mxu0 %v581
    %v649 = vpop.f32.mrb[0].mxu0
    %v650 = vadd.f32 0.0, %v649
    %v651 = vpop.f32.mrb[0].mxu0
    %652 = vdwg.mxu0
    %v653 = vadd.f32 %v340, %v650
    %v654 = vxor.u32 %v653, 2147483648
    %v655 = vmul.f32 %v654, 1.442695
    %v656 = vpow.pop %v655
    %v657 = vadd.f32 %v656, 1.0
    %v658 = vrcp.pop %v657
    %v659 = vmul.f32 1.0, %v658
    %v660 = vtanh.pop %v653
    %v661 = vmul.f32 %v659, %v571
    %663 = vrot.lane.b32.xlu0 %v660, 64
    %v664 = vpop.permute.xlu0 %663
    %v666 = vmul.f32 %v659, %v664
    %668 = vrot.lane.b32.xlu0 %v666, 32
    %v669 = vpop.permute.xlu0 %668
    %v671 = vadd.f32 %v661, %v669
    %v672 = vtanh.pop %v671
    %674 = vrot.lane.b32.xlu0 %v672, 64
    %v675 = vpop.permute.xlu0 %674
    %v677 = vmul.f32 %v659, %v675
    %679 = vrot.lane.b32.xlu0 %v677, 32
    %v680 = vpop.permute.xlu0 %679
    %v681 = vsel %vm375, %v680, 0
    %683 = vmatprep.subr.mxu0 0.0
    %684 = vmatpush1.msra.mxu0 %v368
    %685 = vmatprep.subr.mxu0 0.0
    %686 = vmatpush1.msra.mxu0 %v369
    %687 = vmatprep.subr.mxu0 0.0
    %688 = vmatpush1.msra.mxu0 %v370
    %689 = vmatprep.subr.mxu0 0.0
    %690 = vmatpush1.msra.mxu0 %v371
    %691 = vmatprep.subr.mxu0 0.0
    %692 = vmatpush1.msra.mxu0 0.0
    %693 = vmatprep.subr.mxu0 0.0
    %694 = vmatpush1.msra.mxu0 0.0
    %695 = vmatprep.subr.mxu0 0.0
    %696 = vmatpush1.msra.mxu0 0.0
    %697 = vmatprep.subr.mxu0 0.0
    %698 = vmatpush1.msra.mxu0 0.0
    %699 = vmatprep.subr.mxu0 0.0
    %700 = vmatpush1.msra.mxu0 0.0
    %701 = vmatprep.subr.mxu0 0.0
    %702 = vmatpush1.msra.mxu0 0.0
    %703 = vmatprep.subr.mxu0 0.0
    %704 = vmatpush1.msra.mxu0 0.0
    %705 = vmatprep.subr.mxu0 0.0
    %706 = vmatpush1.msra.mxu0 0.0
    %707 = vmatprep.subr.mxu0 0.0
    %708 = vmatpush1.msra.mxu0 0.0
    %709 = vmatprep.subr.mxu0 0.0
    %710 = vmatpush1.msra.mxu0 0.0
    %711 = vmatprep.subr.mxu0 0.0
    %712 = vmatpush1.msra.mxu0 0.0
    %713 = vmatprep.subr.mxu0 0.0
    %714 = vmatpush1.msra.mxu0 0.0
    %715 = vmatprep.subr.mxu0 0.0
    %716 = vmatpush1.msra.mxu0 0.0
    %717 = vmatprep.subr.mxu0 0.0
    %718 = vmatpush1.msra.mxu0 0.0
    %719 = vmatprep.subr.mxu0 0.0
    %720 = vmatpush1.msra.mxu0 0.0
    %721 = vmatprep.subr.mxu0 0.0
    %722 = vmatpush1.msra.mxu0 0.0
    %723 = vmatprep.subr.mxu0 0.0
    %724 = vmatpush1.msra.mxu0 0.0
    %725 = vmatprep.subr.mxu0 0.0
    %726 = vmatpush1.msra.mxu0 0.0
    %727 = vmatprep.subr.mxu0 0.0
    %728 = vmatpush1.msra.mxu0 0.0
    %729 = vmatprep.subr.mxu0 0.0
    %730 = vmatpush1.msra.mxu0 0.0
    %731 = vmatprep.subr.mxu0 0.0
    %732 = vmatpush1.msra.mxu0 0.0
    %733 = vmatprep.subr.mxu0 0.0
    %734 = vmatpush1.msra.mxu0 0.0
    %735 = vmatprep.subr.mxu0 0.0
    %736 = vmatpush1.msra.mxu0 0.0
    %737 = vmatprep.subr.mxu0 0.0
    %738 = vmatpush1.msra.mxu0 0.0
    %739 = vmatprep.subr.mxu0 0.0
    %740 = vmatpush1.msra.mxu0 0.0
    %741 = vmatprep.subr.mxu0 0.0
    %742 = vmatpush1.msra.mxu0 0.0
    %743 = vmatprep.subr.mxu0 0.0
    %744 = vmatpush1.msra.mxu0 0.0
    %745 = vmatprep.subr.mxu0 0.0
    %746 = vmatpush1.msra.mxu0 0.0
    %747 = vmatprep.mubr.f32.mxu0 0.0
    %748 = vmatmul.mubr.f32.gmra.mrb[0].mxu0 %v681
    %v749 = vpop.f32.mrb[0].mxu0
    %v750 = vadd.f32 0.0, %v749
    %v751 = vpop.f32.mrb[0].mxu0
    %752 = vdwg.mxu0
    %v753 = vadd.f32 %v345, %v750
    %v754 = vxor.u32 %v753, 2147483648
    %v755 = vmul.f32 %v754, 1.442695
    %v756 = vpow.pop %v755
    %v757 = vadd.f32 %v756, 1.0
    %v758 = vrcp.pop %v757
    %v759 = vmul.f32 1.0, %v758
    %v760 = vtanh.pop %v753
    %v761 = vmul.f32 %v759, %v671
    %763 = vrot.lane.b32.xlu0 %v760, 64
    %v764 = vpop.permute.xlu0 %763
    %v766 = vmul.f32 %v759, %v764
    %768 = vrot.lane.b32.xlu0 %v766, 32
    %v769 = vpop.permute.xlu0 %768
    %v771 = vadd.f32 %v761, %v769
    %v772 = vtanh.pop %v771
    %774 = vrot.lane.b32.xlu0 %v772, 64
    %v775 = vpop.permute.xlu0 %774
    %v777 = vmul.f32 %v759, %v775
    %779 = vrot.lane.b32.xlu0 %v777, 32
    %v780 = vpop.permute.xlu0 %779
    %v781 = vsel %vm375, %v780, 0
    %783 = vmatprep.subr.mxu0 0.0
    %784 = vmatpush1.msra.mxu0 %v368
    %785 = vmatprep.subr.mxu0 0.0
    %786 = vmatpush1.msra.mxu0 %v369
    %787 = vmatprep.subr.mxu0 0.0
    %788 = vmatpush1.msra.mxu0 %v370
    %789 = vmatprep.subr.mxu0 0.0
    %790 = vmatpush1.msra.mxu0 %v371
    %791 = vmatprep.subr.mxu0 0.0
    %792 = vmatpush1.msra.mxu0 0.0
    %793 = vmatprep.subr.mxu0 0.0
    %794 = vmatpush1.msra.mxu0 0.0
    %795 = vmatprep.subr.mxu0 0.0
    %796 = vmatpush1.msra.mxu0 0.0
    %797 = vmatprep.subr.mxu0 0.0
    %798 = vmatpush1.msra.mxu0 0.0
    %799 = vmatprep.subr.mxu0 0.0
    %800 = vmatpush1.msra.mxu0 0.0
    %801 = vmatprep.subr.mxu0 0.0
    %802 = vmatpush1.msra.mxu0 0.0
    %803 = vmatprep.subr.mxu0 0.0
    %804 = vmatpush1.msra.mxu0 0.0
    %805 = vmatprep.subr.mxu0 0.0
    %806 = vmatpush1.msra.mxu0 0.0
    %807 = vmatprep.subr.mxu0 0.0
    %808 = vmatpush1.msra.mxu0 0.0
    %809 = vmatprep.subr.mxu0 0.0
    %810 = vmatpush1.msra.mxu0 0.0
    %811 = vmatprep.subr.mxu0 0.0
    %812 = vmatpush1.msra.mxu0 0.0
    %813 = vmatprep.subr.mxu0 0.0
    %814 = vmatpush1.msra.mxu0 0.0
    %815 = vmatprep.subr.mxu0 0.0
    %816 = vmatpush1.msra.mxu0 0.0
    %817 = vmatprep.subr.mxu0 0.0
    %818 = vmatpush1.msra.mxu0 0.0
    %819 = vmatprep.subr.mxu0 0.0
    %820 = vmatpush1.msra.mxu0 0.0
    %821 = vmatprep.subr.mxu0 0.0
    %822 = vmatpush1.msra.mxu0 0.0
    %823 = vmatprep.subr.mxu0 0.0
    %824 = vmatpush1.msra.mxu0 0.0
    %825 = vmatprep.subr.mxu0 0.0
    %826 = vmatpush1.msra.mxu0 0.0
    %827 = vmatprep.subr.mxu0 0.0
    %828 = vmatpush1.msra.mxu0 0.0
    %829 = vmatprep.subr.mxu0 0.0
    %830 = vmatpush1.msra.mxu0 0.0
    %831 = vmatprep.subr.mxu0 0.0
    %832 = vmatpush1.msra.mxu0 0.0
    %833 = vmatprep.subr.mxu0 0.0
    %834 = vmatpush1.msra.mxu0 0.0
    %835 = vmatprep.subr.mxu0 0.0
    %836 = vmatpush1.msra.mxu0 0.0
    %837 = vmatprep.subr.mxu0 0.0
    %838 = vmatpush1.msra.mxu0 0.0
    %839 = vmatprep.subr.mxu0 0.0
    %840 = vmatpush1.msra.mxu0 0.0
    %841 = vmatprep.subr.mxu0 0.0
    %842 = vmatpush1.msra.mxu0 0.0
    %843 = vmatprep.subr.mxu0 0.0
    %844 = vmatpush1.msra.mxu0 0.0
    %845 = vmatprep.subr.mxu0 0.0
    %846 = vmatpush1.msra.mxu0 0.0
    %847 = vmatprep.mubr.f32.mxu0 0.0
    %848 = vmatmul.mubr.f32.gmra.mrb[0].mxu0 %v781
    %v849 = vpop.f32.mrb[0].mxu0
    %v850 = vadd.f32 0.0, %v849
    %v851 = vpop.f32.mrb[0].mxu0
    %852 = vdwg.mxu0
    %v853 = vadd.f32 %v350, %v850
    %v854 = vxor.u32 %v853, 2147483648
    %v855 = vmul.f32 %v854, 1.442695
    %v856 = vpow.pop %v855
    %v857 = vadd.f32 %v856, 1.0
    %v858 = vrcp.pop %v857
    %v859 = vmul.f32 1.0, %v858
    %v860 = vtanh.pop %v853
    %v861 = vmul.f32 %v859, %v771
    %863 = vrot.lane.b32.xlu0 %v860, 64
    %v864 = vpop.permute.xlu0 %863
    %v866 = vmul.f32 %v859, %v864
    %868 = vrot.lane.b32.xlu0 %v866, 32
    %v869 = vpop.permute.xlu0 %868
    %v871 = vadd.f32 %v861, %v869
    %v872 = vtanh.pop %v871
    %874 = vrot.lane.b32.xlu0 %v872, 64
    %v875 = vpop.permute.xlu0 %874
    %v877 = vmul.f32 %v859, %v875
    %879 = vrot.lane.b32.xlu0 %v877, 32
    %v880 = vpop.permute.xlu0 %879
    %v881 = vsel %vm375, %v880, 0
    %883 = vmatprep.subr.mxu0 0.0
    %884 = vmatpush1.msra.mxu0 %v368
    %885 = vmatprep.subr.mxu0 0.0
    %886 = vmatpush1.msra.mxu0 %v369
    %887 = vmatprep.subr.mxu0 0.0
    %888 = vmatpush1.msra.mxu0 %v370
    %889 = vmatprep.subr.mxu0 0.0
    %890 = vmatpush1.msra.mxu0 %v371
    %891 = vmatprep.subr.mxu0 0.0
    %892 = vmatpush1.msra.mxu0 0.0
    %893 = vmatprep.subr.mxu0 0.0
    %894 = vmatpush1.msra.mxu0 0.0
    %895 = vmatprep.subr.mxu0 0.0
    %896 = vmatpush1.msra.mxu0 0.0
    %897 = vmatprep.subr.mxu0 0.0
    %898 = vmatpush1.msra.mxu0 0.0
    %899 = vmatprep.subr.mxu0 0.0
    %900 = vmatpush1.msra.mxu0 0.0
    %901 = vmatprep.subr.mxu0 0.0
    %902 = vmatpush1.msra.mxu0 0.0
    %903 = vmatprep.subr.mxu0 0.0
    %904 = vmatpush1.msra.mxu0 0.0
    %905 = vmatprep.subr.mxu0 0.0
    %906 = vmatpush1.msra.mxu0 0.0
    %907 = vmatprep.subr.mxu0 0.0
    %908 = vmatpush1.msra.mxu0 0.0
    %909 = vmatprep.subr.mxu0 0.0
    %910 = vmatpush1.msra.mxu0 0.0
    %911 = vmatprep.subr.mxu0 0.0
    %912 = vmatpush1.msra.mxu0 0.0
    %913 = vmatprep.subr.mxu0 0.0
    %914 = vmatpush1.msra.mxu0 0.0
    %915 = vmatprep.subr.mxu0 0.0
    %916 = vmatpush1.msra.mxu0 0.0
    %917 = vmatprep.subr.mxu0 0.0
    %918 = vmatpush1.msra.mxu0 0.0
    %919 = vmatprep.subr.mxu0 0.0
    %920 = vmatpush1.msra.mxu0 0.0
    %921 = vmatprep.subr.mxu0 0.0
    %922 = vmatpush1.msra.mxu0 0.0
    %923 = vmatprep.subr.mxu0 0.0
    %924 = vmatpush1.msra.mxu0 0.0
    %925 = vmatprep.subr.mxu0 0.0
    %926 = vmatpush1.msra.mxu0 0.0
    %927 = vmatprep.subr.mxu0 0.0
    %928 = vmatpush1.msra.mxu0 0.0
    %929 = vmatprep.subr.mxu0 0.0
    %930 = vmatpush1.msra.mxu0 0.0
    %931 = vmatprep.subr.mxu0 0.0
    %932 = vmatpush1.msra.mxu0 0.0
    %933 = vmatprep.subr.mxu0 0.0
    %934 = vmatpush1.msra.mxu0 0.0
    %935 = vmatprep.subr.mxu0 0.0
    %936 = vmatpush1.msra.mxu0 0.0
    %937 = vmatprep.subr.mxu0 0.0
    %938 = vmatpush1.msra.mxu0 0.0
    %939 = vmatprep.subr.mxu0 0.0
    %940 = vmatpush1.msra.mxu0 0.0
    %941 = vmatprep.subr.mxu0 0.0
    %942 = vmatpush1.msra.mxu0 0.0
    %943 = vmatprep.subr.mxu0 0.0
    %944 = vmatpush1.msra.mxu0 0.0
    %945 = vmatprep.subr.mxu0 0.0
    %946 = vmatpush1.msra.mxu0 0.0
    %947 = vmatprep.mubr.f32.mxu0 0.0
    %948 = vmatmul.mubr.f32.gmra.mrb[0].mxu0 %v881
    %v949 = vpop.f32.mrb[0].mxu0
    %v950 = vadd.f32 0.0, %v949
    %v951 = vpop.f32.mrb[0].mxu0
    %952 = vdwg.mxu0
    %v953 = vadd.f32 %v355, %v950
    %v954 = vxor.u32 %v953, 2147483648
    %v955 = vmul.f32 %v954, 1.442695
    %v956 = vpow.pop %v955
    %v957 = vadd.f32 %v956, 1.0
    %v958 = vrcp.pop %v957
    %v959 = vmul.f32 1.0, %v958
    %v960 = vtanh.pop %v953
    %v961 = vmul.f32 %v959, %v871
    %963 = vrot.lane.b32.xlu0 %v960, 64
    %v964 = vpop.permute.xlu0 %963
    %v966 = vmul.f32 %v959, %v964
    %968 = vrot.lane.b32.xlu0 %v966, 32
    %v969 = vpop.permute.xlu0 %968
    %v971 = vadd.f32 %v961, %v969
    %v972 = vtanh.pop %v971
    %974 = vrot.lane.b32.xlu0 %v972, 64
    %v975 = vpop.permute.xlu0 %974
    %v977 = vmul.f32 %v959, %v975
    %979 = vrot.lane.b32.xlu0 %v977, 32
    %v980 = vpop.permute.xlu0 %979
    %v981 = vsel %vm375, %v980, 0
    %983 = vmatprep.subr.mxu0 0.0
    %984 = vmatpush1.msra.mxu0 %v368
    %985 = vmatprep.subr.mxu0 0.0
    %986 = vmatpush1.msra.mxu0 %v369
    %987 = vmatprep.subr.mxu0 0.0
    %988 = vmatpush1.msra.mxu0 %v370
    %989 = vmatprep.subr.mxu0 0.0
    %990 = vmatpush1.msra.mxu0 %v371
    %991 = vmatprep.subr.mxu0 0.0
    %992 = vmatpush1.msra.mxu0 0.0
    %993 = vmatprep.subr.mxu0 0.0
    %994 = vmatpush1.msra.mxu0 0.0
    %995 = vmatprep.subr.mxu0 0.0
    %996 = vmatpush1.msra.mxu0 0.0
    %997 = vmatprep.subr.mxu0 0.0
    %998 = vmatpush1.msra.mxu0 0.0
    %999 = vmatprep.subr.mxu0 0.0
    %1000 = vmatpush1.msra.mxu0 0.0
    %1001 = vmatprep.subr.mxu0 0.0
    %1002 = vmatpush1.msra.mxu0 0.0
    %1003 = vmatprep.subr.mxu0 0.0
    %1004 = vmatpush1.msra.mxu0 0.0
    %1005 = vmatprep.subr.mxu0 0.0
    %1006 = vmatpush1.msra.mxu0 0.0
    %1007 = vmatprep.subr.mxu0 0.0
    %1008 = vmatpush1.msra.mxu0 0.0
    %1009 = vmatprep.subr.mxu0 0.0
    %1010 = vmatpush1.msra.mxu0 0.0
    %1011 = vmatprep.subr.mxu0 0.0
    %1012 = vmatpush1.msra.mxu0 0.0
    %1013 = vmatprep.subr.mxu0 0.0
    %1014 = vmatpush1.msra.mxu0 0.0
    %1015 = vmatprep.subr.mxu0 0.0
    %1016 = vmatpush1.msra.mxu0 0.0
    %1017 = vmatprep.subr.mxu0 0.0
    %1018 = vmatpush1.msra.mxu0 0.0
    %1019 = vmatprep.subr.mxu0 0.0
    %1020 = vmatpush1.msra.mxu0 0.0
    %1021 = vmatprep.subr.mxu0 0.0
    %1022 = vmatpush1.msra.mxu0 0.0
    %1023 = vmatprep.subr.mxu0 0.0
    %1024 = vmatpush1.msra.mxu0 0.0
    %1025 = vmatprep.subr.mxu0 0.0
    %1026 = vmatpush1.msra.mxu0 0.0
    %1027 = vmatprep.subr.mxu0 0.0
    %1028 = vmatpush1.msra.mxu0 0.0
    %1029 = vmatprep.subr.mxu0 0.0
    %1030 = vmatpush1.msra.mxu0 0.0
    %1031 = vmatprep.subr.mxu0 0.0
    %1032 = vmatpush1.msra.mxu0 0.0
    %1033 = vmatprep.subr.mxu0 0.0
    %1034 = vmatpush1.msra.mxu0 0.0
    %1035 = vmatprep.subr.mxu0 0.0
    %1036 = vmatpush1.msra.mxu0 0.0
    %1037 = vmatprep.subr.mxu0 0.0
    %1038 = vmatpush1.msra.mxu0 0.0
    %1039 = vmatprep.subr.mxu0 0.0
    %1040 = vmatpush1.msra.mxu0 0.0
    %1041 = vmatprep.subr.mxu0 0.0
    %1042 = vmatpush1.msra.mxu0 0.0
    %1043 = vmatprep.subr.mxu0 0.0
    %1044 = vmatpush1.msra.mxu0 0.0
    %1045 = vmatprep.subr.mxu0 0.0
    %1046 = vmatpush1.msra.mxu0 0.0
    %1047 = vmatprep.mubr.f32.mxu0 0.0
    %1048 = vmatmul.mubr.f32.gmra.mrb[0].mxu0 %v981
    %v1049 = vpop.f32.mrb[0].mxu0
    %v1050 = vadd.f32 0.0, %v1049
    %v1051 = vpop.f32.mrb[0].mxu0
    %1052 = vdwg.mxu0
    %v1053 = vadd.f32 %v360, %v1050
    %v1054 = vxor.u32 %v1053, 2147483648
    %v1055 = vmul.f32 %v1054, 1.442695
    %v1056 = vpow.pop %v1055
    %v1057 = vadd.f32 %v1056, 1.0
    %v1058 = vrcp.pop %v1057
    %v1059 = vmul.f32 1.0, %v1058
    %v1060 = vtanh.pop %v1053
    %v1061 = vmul.f32 %v1059, %v971
    %1063 = vrot.lane.b32.xlu0 %v1060, 64
    %v1064 = vpop.permute.xlu0 %1063
    %v1066 = vmul.f32 %v1059, %v1064
    %1068 = vrot.lane.b32.xlu0 %v1066, 32
    %v1069 = vpop.permute.xlu0 %1068
    %v1071 = vadd.f32 %v1061, %v1069
    %v1072 = vtanh.pop %v1071
    %1074 = vrot.lane.b32.xlu0 %v1072, 64
    %v1075 = vpop.permute.xlu0 %1074
    %v1077 = vmul.f32 %v1059, %v1075
    %1079 = vrot.lane.b32.xlu0 %v1077, 32
    %v1080 = vpop.permute.xlu0 %1079
    %v1081 = vsel %vm375, %v1080, 0
    %1083 = vmatprep.subr.mxu0 0.0
    %1084 = vmatpush1.msra.mxu0 %v368
    %1085 = vmatprep.subr.mxu0 0.0
    %1086 = vmatpush1.msra.mxu0 %v369
    %1087 = vmatprep.subr.mxu0 0.0
    %1088 = vmatpush1.msra.mxu0 %v370
    %1089 = vmatprep.subr.mxu0 0.0
    %1090 = vmatpush1.msra.mxu0 %v371
    %1091 = vmatprep.subr.mxu0 0.0
    %1092 = vmatpush1.msra.mxu0 0.0
    %1093 = vmatprep.subr.mxu0 0.0
    %1094 = vmatpush1.msra.mxu0 0.0
    %1095 = vmatprep.subr.mxu0 0.0
    %1096 = vmatpush1.msra.mxu0 0.0
    %1097 = vmatprep.subr.mxu0 0.0
    %1098 = vmatpush1.msra.mxu0 0.0
    %1099 = vmatprep.subr.mxu0 0.0
    %1100 = vmatpush1.msra.mxu0 0.0
    %1101 = vmatprep.subr.mxu0 0.0
    %1102 = vmatpush1.msra.mxu0 0.0
    %1103 = vmatprep.subr.mxu0 0.0
    %1104 = vmatpush1.msra.mxu0 0.0
    %1105 = vmatprep.subr.mxu0 0.0
    %1106 = vmatpush1.msra.mxu0 0.0
    %1107 = vmatprep.subr.mxu0 0.0
    %1108 = vmatpush1.msra.mxu0 0.0
    %1109 = vmatprep.subr.mxu0 0.0
    %1110 = vmatpush1.msra.mxu0 0.0
    %1111 = vmatprep.subr.mxu0 0.0
    %1112 = vmatpush1.msra.mxu0 0.0
    %1113 = vmatprep.subr.mxu0 0.0
    %1114 = vmatpush1.msra.mxu0 0.0
    %1115 = vmatprep.subr.mxu0 0.0
    %1116 = vmatpush1.msra.mxu0 0.0
    %1117 = vmatprep.subr.mxu0 0.0
    %1118 = vmatpush1.msra.mxu0 0.0
    %1119 = vmatprep.subr.mxu0 0.0
    %1120 = vmatpush1.msra.mxu0 0.0
    %1121 = vmatprep.subr.mxu0 0.0
    %1122 = vmatpush1.msra.mxu0 0.0
    %1123 = vmatprep.subr.mxu0 0.0
    %1124 = vmatpush1.msra.mxu0 0.0
    %1125 = vmatprep.subr.mxu0 0.0
    %1126 = vmatpush1.msra.mxu0 0.0
    %1127 = vmatprep.subr.mxu0 0.0
    %1128 = vmatpush1.msra.mxu0 0.0
    %1129 = vmatprep.subr.mxu0 0.0
    %1130 = vmatpush1.msra.mxu0 0.0
    %1131 = vmatprep.subr.mxu0 0.0
    %1132 = vmatpush1.msra.mxu0 0.0
    %1133 = vmatprep.subr.mxu0 0.0
    %1134 = vmatpush1.msra.mxu0 0.0
    %1135 = vmatprep.subr.mxu0 0.0
    %1136 = vmatpush1.msra.mxu0 0.0
    %1137 = vmatprep.subr.mxu0 0.0
    %1138 = vmatpush1.msra.mxu0 0.0
    %1139 = vmatprep.subr.mxu0 0.0
    %1140 = vmatpush1.msra.mxu0 0.0
    %1141 = vmatprep.subr.mxu0 0.0
    %1142 = vmatpush1.msra.mxu0 0.0
    %1143 = vmatprep.subr.mxu0 0.0
    %1144 = vmatpush1.msra.mxu0 0.0
    %1145 = vmatprep.subr.mxu0 0.0
    %1146 = vmatpush1.msra.mxu0 0.0
    %1147 = vmatprep.mubr.f32.mxu0 0.0
    %1148 = vmatmul.mubr.f32.gmra.mrb[0].mxu0 %v1081
    %v1149 = vpop.f32.mrb[0].mxu0
    %v1150 = vadd.f32 0.0, %v1149
    %v1151 = vpop.f32.mrb[0].mxu0
    %1152 = vdwg.mxu0
    %v1153 = vadd.f32 %v365, %v1150
    %v1154 = vxor.u32 %v1153, 2147483648
    %v1155 = vmul.f32 %v1154, 1.442695
    %v1156 = vpow.pop %v1155
    %v1157 = vadd.f32 %v1156, 1.0
    %v1158 = vrcp.pop %v1157
    %v1159 = vmul.f32 1.0, %v1158
    %v1160 = vtanh.pop %v1153
    %v1161 = vmul.f32 %v1159, %v1071
    %1163 = vrot.lane.b32.xlu0 %v1160, 64
    %v1164 = vpop.permute.xlu0 %1163
    %v1166 = vmul.f32 %v1159, %v1164
    %1168 = vrot.lane.b32.xlu0 %v1166, 32
    %v1169 = vpop.permute.xlu0 %1168
    %v1171 = vadd.f32 %v1161, %v1169
    %v1172 = vtanh.pop %v1171
    %1174 = vrot.lane.b32.xlu0 %v1172, 64
    %v1175 = vpop.permute.xlu0 %1174
    %v1177 = vmul.f32 %v1159, %v1175
    %1179 = vrot.lane.b32.xlu0 %v1177, 32
    %v1180 = vpop.permute.xlu0 %1179
    %1182 = vst.msk [vmem:[#allocation9] sm:$0xff] %vm375, %v1180
    %1184 = vrot.lane.b32.xlu0 %v1171, 96
    %v1185 = vpop.permute.xlu0 %1184
    %s1187 = scalar_lea.vmem [#allocation9], 8
    %1188 = vst.msk [vmem:[%s1187] sm:$0xff] %vm375, %v1185
    %v1189 = vld [vmem:[%s5] sm:$0xff]
    %v1190 = vld [vmem:[%s5 + $0x8] sm:$0xff]
    %v1191 = vld [vmem:[%s5 + $0x10] sm:$0xff]
    %v1192 = vld [vmem:[%s5 + $0x18] sm:$0xff]
    %v1193 = vlaneseq
    %v1194 = vshrl.u32 %v1193, 7
    %v1195 = vsub.s32 0, %v1194
    %v1196 = vrot.slane %v73, %v1195
    %v1197 = vsel %vm375, %v1180, 0
    %1199 = vmatprep.subr.mxu0 0.0
    %1200 = vmatpush1.msra.mxu0 %v1189
    %1201 = vmatprep.subr.mxu0 0.0
    %1202 = vmatpush1.msra.mxu0 %v1190
    %1203 = vmatprep.subr.mxu0 0.0
    %1204 = vmatpush1.msra.mxu0 %v1191
    %1205 = vmatprep.subr.mxu0 0.0
    %1206 = vmatpush1.msra.mxu0 %v1192
    %1207 = vmatprep.subr.mxu0 0.0
    %1208 = vmatpush1.msra.mxu0 0.0
    %1209 = vmatprep.subr.mxu0 0.0
    %1210 = vmatpush1.msra.mxu0 0.0
    %1211 = vmatprep.subr.mxu0 0.0
    %1212 = vmatpush1.msra.mxu0 0.0
    %1213 = vmatprep.subr.mxu0 0.0
    %1214 = vmatpush1.msra.mxu0 0.0
    %1215 = vmatprep.subr.mxu0 0.0
    %1216 = vmatpush1.msra.mxu0 0.0
    %1217 = vmatprep.subr.mxu0 0.0
    %1218 = vmatpush1.msra.mxu0 0.0
    %1219 = vmatprep.subr.mxu0 0.0
    %1220 = vmatpush1.msra.mxu0 0.0
    %1221 = vmatprep.subr.mxu0 0.0
    %1222 = vmatpush1.msra.mxu0 0.0
    %1223 = vmatprep.subr.mxu0 0.0
    %1224 = vmatpush1.msra.mxu0 0.0
    %1225 = vmatprep.subr.mxu0 0.0
    %1226 = vmatpush1.msra.mxu0 0.0
    %1227 = vmatprep.subr.mxu0 0.0
    %1228 = vmatpush1.msra.mxu0 0.0
    %1229 = vmatprep.subr.mxu0 0.0
    %1230 = vmatpush1.msra.mxu0 0.0
    %1231 = vmatprep.subr.mxu0 0.0
    %1232 = vmatpush1.msra.mxu0 0.0
    %1233 = vmatprep.subr.mxu0 0.0
    %1234 = vmatpush1.msra.mxu0 0.0
    %1235 = vmatprep.subr.mxu0 0.0
    %1236 = vmatpush1.msra.mxu0 0.0
    %1237 = vmatprep.subr.mxu0 0.0
    %1238 = vmatpush1.msra.mxu0 0.0
    %1239 = vmatprep.subr.mxu0 0.0
    %1240 = vmatpush1.msra.mxu0 0.0
    %1241 = vmatprep.subr.mxu0 0.0
    %1242 = vmatpush1.msra.mxu0 0.0
    %1243 = vmatprep.subr.mxu0 0.0
    %1244 = vmatpush1.msra.mxu0 0.0
    %1245 = vmatprep.subr.mxu0 0.0
    %1246 = vmatpush1.msra.mxu0 0.0
    %1247 = vmatprep.subr.mxu0 0.0
    %1248 = vmatpush1.msra.mxu0 0.0
    %1249 = vmatprep.subr.mxu0 0.0
    %1250 = vmatpush1.msra.mxu0 0.0
    %1251 = vmatprep.subr.mxu0 0.0
    %1252 = vmatpush1.msra.mxu0 0.0
    %1253 = vmatprep.subr.mxu0 0.0
    %1254 = vmatpush1.msra.mxu0 0.0
    %1255 = vmatprep.subr.mxu0 0.0
    %1256 = vmatpush1.msra.mxu0 0.0
    %1257 = vmatprep.subr.mxu0 0.0
    %1258 = vmatpush1.msra.mxu0 0.0
    %1259 = vmatprep.subr.mxu0 0.0
    %1260 = vmatpush1.msra.mxu0 0.0
    %1261 = vmatprep.subr.mxu0 0.0
    %1262 = vmatpush1.msra.mxu0 0.0
    %1263 = vmatprep.mubr.f32.mxu0 0.0
    %1264 = vmatmul.mubr.f32.gmra.mrb[0].mxu0 %v481
    %v1265 = vpop.f32.mrb[0].mxu0
    %v1266 = vadd.f32 %v1196, %v1265
    %v1267 = vpop.f32.mrb[0].mxu0
    %1268 = vmatprep.mubr.f32.mxu0 0.0
    %1269 = vmatmul.mubr.f32.gmra.mrb[0].mxu0 %v581
    %v1270 = vpop.f32.mrb[0].mxu0
    %v1271 = vadd.f32 %v1196, %v1270
    %v1272 = vpop.f32.mrb[0].mxu0
    %1273 = vmatprep.mubr.f32.mxu0 0.0
    %1274 = vmatmul.mubr.f32.gmra.mrb[0].mxu0 %v681
    %v1275 = vpop.f32.mrb[0].mxu0
    %v1276 = vadd.f32 %v1196, %v1275
    %v1277 = vpop.f32.mrb[0].mxu0
    %1278 = vmatprep.mubr.f32.mxu0 0.0
    %1279 = vmatmul.mubr.f32.gmra.mrb[0].mxu0 %v781
    %v1280 = vpop.f32.mrb[0].mxu0
    %v1281 = vadd.f32 %v1196, %v1280
    %v1282 = vpop.f32.mrb[0].mxu0
    %1283 = vmatprep.mubr.f32.mxu0 0.0
    %1284 = vmatmul.mubr.f32.gmra.mrb[0].mxu0 %v881
    %v1285 = vpop.f32.mrb[0].mxu0
    %v1286 = vadd.f32 %v1196, %v1285
    %v1287 = vpop.f32.mrb[0].mxu0
    %1288 = vmatprep.mubr.f32.mxu0 0.0
    %1289 = vmatmul.mubr.f32.gmra.mrb[0].mxu0 %v981
    %v1290 = vpop.f32.mrb[0].mxu0
    %v1291 = vadd.f32 %v1196, %v1290
    %v1292 = vpop.f32.mrb[0].mxu0
    %1293 = vmatprep.mubr.f32.mxu0 0.0
    %1294 = vmatmul.mubr.f32.gmra.mrb[0].mxu0 %v1081
    %v1295 = vpop.f32.mrb[0].mxu0
    %v1296 = vadd.f32 %v1196, %v1295
    %v1297 = vpop.f32.mrb[0].mxu0
    %1298 = vmatprep.mubr.f32.mxu0 0.0
    %1299 = vmatmul.mubr.f32.gmra.mrb[0].mxu0 %v1197
    %v1300 = vpop.f32.mrb[0].mxu0
    %v1301 = vadd.f32 %v1196, %v1300
    %v1302 = vpop.f32.mrb[0].mxu0
    %1303 = vdwg.mxu0
    %1304 = vst [vmem:[#allocation8] sm:$0xff] %v1266
    %1305 = vst [vmem:[#allocation8 + $0x8] sm:$0xff] %v1271
    %1306 = vst [vmem:[#allocation8 + $0x10] sm:$0xff] %v1276
    %1307 = vst [vmem:[#allocation8 + $0x18] sm:$0xff] %v1281
    %1308 = vst [vmem:[#allocation8 + $0x20] sm:$0xff] %v1286
    %1309 = vst [vmem:[#allocation8 + $0x28] sm:$0xff] %v1291
    %1310 = vst [vmem:[#allocation8 + $0x30] sm:$0xff] %v1296
    %1311 = vst [vmem:[#allocation8 + $0x38] sm:$0xff] %v1301
    // Predicated region
    $region42: #{tpu_custom_call.1} parent=1 // pred_check
      _
    $region43: #{tpu_custom_call.1} parent=1 // pred_check_branch
      %1313 = sbr.rel (0) target = $region45
    $region44: #{tpu_custom_call.1} parent=1 // pred_region
      %s1315 = ssub.s32 1024, 1024
      %1316 = vsyncadd [#allocation4], %s1315
      %s1317 = sshll.u32 [#allocation8], 4
      %s1318 = int_to_ptr.vmem [resolvable:$true] %s1317
      %1323 = dma.vmem_to_hbm [thread:$0]  %s1318, 1024, %s7, [#allocation4], 128, 128, 8
    $region45: #{tpu_custom_call.1} parent=1 // pred_fallthru
      _
    // Predicated region
    $region46: #{tpu_custom_call.1} parent=1 // pred_check
      _
    $region47: #{tpu_custom_call.1} parent=1 // pred_check_branch
      %1325 = sbr.rel (0) target = $region49
    $region48: #{tpu_custom_call.1} parent=1 // pred_region
      %s1327 = ssub.s32 256, 256
      %1328 = vsyncadd [#allocation10], %s1327
      %s1329 = sshll.u32 [#allocation9], 4
      %s1330 = int_to_ptr.vmem [resolvable:$true] %s1329
      %1335 = dma.vmem_to_hbm [thread:$0]  %s1330, 256, %s8, [#allocation10], 128, 128, 8
    $region49: #{tpu_custom_call.1} parent=1 // pred_fallthru
      _
    // Predicated region
    $region50: #{tpu_custom_call.1} parent=1 // pred_check
      _
    $region51: #{tpu_custom_call.1} parent=1 // pred_check_branch
      %1337 = sbr.rel (0) target = $region53
    $region52: #{tpu_custom_call.1} parent=1 // pred_region
      %1338 = dma.done [#allocation4], 1024
    $region53: #{tpu_custom_call.1} parent=1 // pred_fallthru
      _
    // Predicated region
    $region54: #{tpu_custom_call.1} parent=1 // pred_check
      _
    $region55: #{tpu_custom_call.1} parent=1 // pred_check_branch
      %1340 = sbr.rel (0) target = $region57
    $region56: #{tpu_custom_call.1} parent=1 // pred_region
      %1341 = dma.done [#allocation10], 256
    $region57: #{tpu_custom_call.1} parent=1 // pred_fallthru
      _
    %1342 = vsyncpa [#allocation3], 1
    %1343 = vsyncpa [#allocation6], 1
    %1344 = vsyncpa [#allocation4], 1
    %1345 = vsyncpa [#allocation10], 1

</llo_original>
